<compile_context>
chip_gen: v5e
topology: v5e:2x2
jax: 0.10.0
libtpu: 0.0.40
codegen_flags: <defaults>
</compile_context>

<pallas_src>
import functools
import numpy as np

import jax
import jax.numpy as jnp
from jax import lax
from jax.experimental import pallas as pl
from jax.experimental.pallas import tpu as pltpu

_EPS = 1e-5
_LANE = 128


def _round_up(v, m):
    return (v + m - 1) // m * m


def _bottleneck_kernel(x_ref, w1_ref, w2_ref, w3_ref,
                       b1_ref, b2_ref, b3_ref, *rest,
                       H, W, Ho, Wo, NB, Cp, Mp, Op,
                       stride, has_downsample):
    """NB images per grid step:
       conv1x1+bias+relu -> conv3x3+bias -> conv1x1+bias -> (+identity) -> relu.
       All BN scales are pre-folded into the weights in the wrapper; BN biases
       are added here in f32."""
    if has_downsample:
        wd_ref, bd_ref, o_ref = rest
    else:
        (o_ref,) = rest

    cdt = x_ref.dtype                      # compute dtype (bf16 or f32)
    rows_in = NB * H * W
    rows_out = NB * Ho * Wo

    x = x_ref[...]                         # (NB, H, W, Cp)

    # ---- conv1 (1x1, stride 1): bn1 scale folded into w1; bias + relu ----
    t = jnp.dot(x.reshape(rows_in, Cp), w1_ref[...],
                preferred_element_type=jnp.float32)
    t = jnp.maximum(t + b1_ref[...], 0.0)                     # (rows_in, Mp) f32

    # ---- conv2 (3x3, pad=1, stride) --------------------------------------
    # Zero halo built in registers with two dense concats (no scratch, no
    # masked halo stores).  For each kh the three kw taps are stacked along the
    # lane axis -> one deep K=3*Mp matmul per kh; partial sums accumulate in a
    # compiler-managed value (no per-tap VMEM RMW).
    t4 = t.reshape(NB, H, W, Mp).astype(cdt)
    zw = jnp.zeros((NB, H, 1, Mp), cdt)
    tw = jnp.concatenate([zw, t4, zw], axis=2)                # (NB, H, W+2, Mp)
    zh = jnp.zeros((NB, 1, W + 2, Mp), cdt)
    tp = jnp.concatenate([zh, tw, zh], axis=1)                # (NB, H+2, W+2, Mp)

    acc = None
    for kh in range(3):
        if stride == 1:
            row = tp[:, kh:kh + Ho, :, :]                     # (NB, Ho, W+2, Mp)
            taps = [row[:, :, kw:kw + Wo, :] for kw in range(3)]
        else:
            # TODO(synk): stride>1 path (strided window slices) is implemented
            # but not exercised by the demo below.
            row = tp[:, kh:kh + stride * (Ho - 1) + 1:stride, :, :]
            taps = [row[:, :, kw:kw + stride * (Wo - 1) + 1:stride, :]
                    for kw in range(3)]
        stacked = jnp.concatenate(taps, axis=-1)              # (NB, Ho, Wo, 3*Mp)
        contrib = jnp.dot(stacked.reshape(rows_out, 3 * Mp), w2_ref[kh],
                          preferred_element_type=jnp.float32)
        acc = contrib if acc is None else acc + contrib
    t = acc + b2_ref[...]                                     # bn2 bias, no relu

    # ---- conv3 (1x1): bn3 scale folded into w3; bias ----
    t = jnp.dot(t.astype(cdt), w3_ref[...],
                preferred_element_type=jnp.float32) + b3_ref[...]

    # ---- identity / downsample branch ----
    if has_downsample:
        if stride == 1:
            xs = x
        else:
            xs = x[:, 0:stride * (Ho - 1) + 1:stride,
                   0:stride * (Wo - 1) + 1:stride, :]
        ident = jnp.dot(xs.reshape(rows_out, Cp), wd_ref[...],
                        preferred_element_type=jnp.float32) + bd_ref[...]
    else:
        ident = x.reshape(rows_out, Cp).astype(jnp.float32)   # Cp == Op here

    out = jnp.maximum(t + ident, 0.0)
    o_ref[...] = out.reshape(NB, Ho, Wo, Op).astype(o_ref.dtype)


def _fold_bn_into_weight(w, bn, eps=_EPS):
    """Return (w * scale_on_out_channels, bias), both f32 math."""
    gamma, beta, mean, var = bn
    scale = gamma * lax.rsqrt(var + eps)
    bias = beta - mean * scale
    shape = [1] * w.ndim
    shape[-1] = -1
    return w.astype(jnp.float32) * scale.reshape(shape), bias.astype(jnp.float32)


def _pad_last2(w, r, c):
    pads = [(0, 0)] * (w.ndim - 2) + [(0, r - w.shape[-2]), (0, c - w.shape[-1])]
    return jnp.pad(w, pads)


def _pad_bias(b, n):
    return jnp.pad(b, (0, n - b.shape[0])).reshape(1, n).astype(jnp.float32)


def _vmem_capacity_bytes():
    try:
        info = pltpu.get_tpu_info()
        cap = int(getattr(info, "vmem_capacity_bytes", 0))
        if cap > 0:
            return cap
    except Exception:
        pass
    return 128 << 20


def _vmem_footprint(nb, H, W, Ho, Wo, Cp, Mp, Op, cbytes, obytes, has_downsample):
    """Rough per-grid-step VMEM estimate: double-buffered I/O blocks, weights,
    and the dominant compiler-managed temporaries inside the kernel."""
    rows_in = nb * H * W
    rows_out = nb * Ho * Wo
    io = 2 * rows_in * Cp * cbytes + 2 * rows_out * Op * obytes
    wts = (Cp * Mp + 9 * Mp * Mp + Mp * Op
           + (Cp * Op if has_downsample else 0)) * cbytes
    wts = 2 * wts + 2 * (2 * Mp + 2 * Op) * 4
    tmp = (rows_in * Mp * (4 + cbytes)                 # conv1 out (f32) + cast
           + nb * (H + 2) * (W + 2) * Mp * cbytes      # zero-padded conv1 output
           + rows_out * 3 * Mp * cbytes                # kw-stacked window
           + rows_out * Mp * 4                         # conv2 accumulator (f32)
           + 2 * rows_out * Op * 4)                    # conv3 out + identity (f32)
    return io + wts + tmp


def bottleneck_forward_nhwc(x_nhwc, params, *, stride=1,
                            compute_dtype=jnp.bfloat16, out_dtype=None,
                            vmem_limit_bytes=None):
    """Pallas implementation of BottleNeck.forward on NHWC activations
    (inference-mode BatchNorm with running statistics)."""
    N, H, W, Cin = x_nhwc.shape
    Cmid = params["w1"].shape[1]
    Cout = params["w3"].shape[1]
    has_downsample = (stride != 1) or (Cin != Cout)
    Ho = (H + 2 - 3) // stride + 1
    Wo = (W + 2 - 3) // stride + 1
    if out_dtype is None:
        out_dtype = x_nhwc.dtype

    # Pad every channel dim to a lane-width multiple for dense MXU/VPU/stores.
    Cp = _round_up(Cin, _LANE)
    Mp = _round_up(Cmid, _LANE)
    Op = _round_up(Cout, _LANE)

    # Fold BN scales into conv weights; keep biases separate (f32).
    w1, b1 = _fold_bn_into_weight(params["w1"], params["bn1"])
    w2, b2 = _fold_bn_into_weight(params["w2"], params["bn2"])
    w3, b3 = _fold_bn_into_weight(params["w3"], params["bn3"])
    w1 = _pad_last2(w1, Cp, Mp).astype(compute_dtype)
    # w2: (3,3,Mp,Mp) -> (3, 3*Mp, Mp) -- kw taps stacked along the K axis so
    # the kernel's lane-stacked windows hit the MXU with K = 3*Mp per kh.
    w2 = _pad_last2(w2, Mp, Mp).astype(compute_dtype).reshape(3, 3 * Mp, Mp)
    w3 = _pad_last2(w3, Mp, Op).astype(compute_dtype)
    b1 = _pad_bias(b1, Mp)
    b2 = _pad_bias(b2, Mp)
    b3 = _pad_bias(b3, Op)

    extra_args = []
    if has_downsample:
        wd, bd = _fold_bn_into_weight(params["wd"], params["bnd"])
        extra_args = [_pad_last2(wd, Cp, Op).astype(compute_dtype),
                      _pad_bias(bd, Op)]

    # ---- choose nb (images per grid step) from the real VMEM budget ----
    cbytes = jnp.dtype(compute_dtype).itemsize
    obytes = jnp.dtype(out_dtype).itemsize
    vmem_cap = _vmem_capacity_bytes()              # 64 MiB v7x, 128 MiB v5e/v6e
    budget = int(0.70 * vmem_cap)

    def footprint(nb):
        return _vmem_footprint(nb, H, W, Ho, Wo, Cp, Mp, Op,
                               cbytes, obytes, has_downsample)

    nb_cap = max(1, (N + 1) // 2)                  # >= 2 grid steps when N >= 2
    nb = 1
    for cand in range(1, nb_cap + 1):
        if footprint(cand) <= budget:
            nb = cand
    while N % nb != 0:                             # never compute padded batch rows
        nb -= 1
    # TODO(synk): for very large H*W a second grid axis over Ho strips would be
    # needed; here a single image is assumed to fit the VMEM budget.

    if vmem_limit_bytes is None:
        vmem_limit_bytes = int(min(0.9 * vmem_cap,
                                   max(2 * footprint(nb), 32 << 20)))

    xp = x_nhwc.astype(compute_dtype)              # cast before pad (halves copy)
    if Cp != Cin:
        xp = jnp.pad(xp, ((0, 0), (0, 0), (0, 0), (0, Cp - Cin)))

    kernel = functools.partial(
        _bottleneck_kernel,
        H=H, W=W, Ho=Ho, Wo=Wo, NB=nb, Cp=Cp, Mp=Mp, Op=Op,
        stride=stride, has_downsample=has_downsample)

    in_specs = [
        pl.BlockSpec((nb, H, W, Cp), lambda g: (g, 0, 0, 0)),      # x
        pl.BlockSpec((Cp, Mp), lambda g: (0, 0)),                  # w1 (bn1 folded)
        pl.BlockSpec((3, 3 * Mp, Mp), lambda g: (0, 0, 0)),        # w2 (bn2 folded)
        pl.BlockSpec((Mp, Op), lambda g: (0, 0)),                  # w3 (bn3 folded)
        pl.BlockSpec((1, Mp), lambda g: (0, 0)),                   # b1
        pl.BlockSpec((1, Mp), lambda g: (0, 0)),                   # b2
        pl.BlockSpec((1, Op), lambda g: (0, 0)),                   # b3
    ]
    if has_downsample:
        in_specs += [
            pl.BlockSpec((Cp, Op), lambda g: (0, 0)),              # wd (bnd folded)
            pl.BlockSpec((1, Op), lambda g: (0, 0)),               # bd
        ]

    out_nhwc = pl.pallas_call(
        kernel,
        out_shape=jax.ShapeDtypeStruct((N, Ho, Wo, Op), out_dtype),
        grid=(N // nb,),
        in_specs=in_specs,
        out_specs=pl.BlockSpec((nb, Ho, Wo, Op), lambda g: (g, 0, 0, 0)),
        compiler_params=pltpu.CompilerParams(
            dimension_semantics=("parallel",),
            vmem_limit_bytes=vmem_limit_bytes),
    )(xp, w1, w2, w3, b1, b2, b3, *extra_args)

    return out_nhwc[:, :, :, :Cout]


def bottleneck_forward(x_nchw, params, *, stride=1,
                       compute_dtype=jnp.bfloat16, out_dtype=None,
                       vmem_limit_bytes=None):
    """NCHW wrapper (PyTorch layout). Callers that can supply/consume NHWC
    should use bottleneck_forward_nhwc directly and skip the two transposes."""
    x_nhwc = jnp.transpose(x_nchw, (0, 2, 3, 1))
    out = bottleneck_forward_nhwc(x_nhwc, params, stride=stride,
                                  compute_dtype=compute_dtype,
                                  out_dtype=out_dtype,
                                  vmem_limit_bytes=vmem_limit_bytes)
    return jnp.transpose(out, (0, 3, 1, 2))


# ---------------- pure-JAX reference (for correctness check) ----------------
def bottleneck_reference(x_nchw, params, *, stride=1):
    Cin = params["w1"].shape[0]
    Cmid = params["w1"].shape[1]
    Cout = params["w3"].shape[1]
    has_downsample = (stride != 1) or (Cin != Cout)
    dn = ("NHWC", "HWIO", "NHWC")

    def bn(y, g, b, m, v):
        s = g * lax.rsqrt(v + _EPS)
        return y * s + (b - m * s)

    x = jnp.transpose(x_nchw, (0, 2, 3, 1)).astype(jnp.float32)
    t = lax.conv_general_dilated(x, params["w1"].reshape(1, 1, Cin, Cmid),
                                 (1, 1), "VALID", dimension_numbers=dn)
    t = jax.nn.relu(bn(t, *params["bn1"]))
    t = lax.conv_general_dilated(t, params["w2"], (stride, stride),
                                 ((1, 1), (1, 1)), dimension_numbers=dn)
    t = bn(t, *params["bn2"])
    t = lax.conv_general_dilated(t, params["w3"].reshape(1, 1, Cmid, Cout),
                                 (1, 1), "VALID", dimension_numbers=dn)
    t = bn(t, *params["bn3"])
    if has_downsample:
        ident = lax.conv_general_dilated(x, params["wd"].reshape(1, 1, Cin, Cout),
                                         (stride, stride), "VALID",
                                         dimension_numbers=dn)
        ident = bn(ident, *params["bnd"])
    else:
        ident = x
    out = jax.nn.relu(t + ident)
    return jnp.transpose(out, (0, 3, 1, 2))


def _make_params(key, Cin, Cmid, Cout, has_downsample):
    ks = jax.random.split(key, 8)

    def bn_params(k, C):
        k1, k2, k3, k4 = jax.random.split(k, 4)
        gamma = 1.0 + 0.1 * jax.random.normal(k1, (C,), jnp.float32)
        beta = 0.1 * jax.random.normal(k2, (C,), jnp.float32)
        mean = 0.1 * jax.random.normal(k3, (C,), jnp.float32)
        var = 0.5 + jnp.abs(jax.random.normal(k4, (C,), jnp.float32))
        return (gamma, beta, mean, var)

    params = {
        "w1": 0.2 * jax.random.normal(ks[0], (Cin, Cmid), jnp.float32),
        "w2": 0.2 * jax.random.normal(ks[1], (3, 3, Cmid, Cmid), jnp.float32),
        "w3": 0.2 * jax.random.normal(ks[2], (Cmid, Cout), jnp.float32),
        "bn1": bn_params(ks[3], Cmid),
        "bn2": bn_params(ks[4], Cmid),
        "bn3": bn_params(ks[5], Cout),
    }
    if has_downsample:
        params["wd"] = 0.2 * jax.random.normal(ks[6], (Cin, Cout), jnp.float32)
        params["bnd"] = bn_params(ks[7], Cout)
    return params


if __name__ == "__main__":
    key = jax.random.PRNGKey(0)
    k_x, k_p, k_x2, k_p2 = jax.random.split(key, 4)

    # Config A: BottleNeck(in_channels=4, out_channels=16, stride=1)
    #   -> mid_channels = 4, downsample path active (4 != 16)
    N, Cin, H, W = 2, 4, 16, 16
    Cout, stride = 16, 1
    Cmid = Cout // 4
    x = jax.random.normal(k_x, (N, Cin, H, W), jnp.float32)
    params = _make_params(k_p, Cin, Cmid, Cout, True)

    ref = jax.block_until_ready(bottleneck_reference(x, params, stride=stride))

    # f32 compute path: tight tolerance.
    out_f32 = jax.block_until_ready(
        bottleneck_forward(x, params, stride=stride, compute_dtype=jnp.float32))
    np.testing.assert_allclose(np.asarray(out_f32), np.asarray(ref),
                               rtol=1e-4, atol=1e-4)

    # Default bf16 MXU inputs (v6e/v7x fast path); f32 accumulation throughout.
    out_bf16 = jax.block_until_ready(bottleneck_forward(x, params, stride=stride))
    np.testing.assert_allclose(np.asarray(out_bf16), np.asarray(ref),
                               rtol=5e-2, atol=5e-2)

    # Config B: BottleNeck(in_channels=16, out_channels=16, stride=1)
    #   -> identity passthrough variant (no downsample operands at all)
    x2 = jax.random.normal(k_x2, (N, 16, H, W), jnp.float32)
    params2 = _make_params(k_p2, 16, 4, 16, False)
    out2 = jax.block_until_ready(
        bottleneck_forward(x2, params2, stride=1, compute_dtype=jnp.float32))
    ref2 = jax.block_until_ready(bottleneck_reference(x2, params2, stride=1))
    np.testing.assert_allclose(np.asarray(out2), np.asarray(ref2),
                               rtol=1e-4, atol=1e-4)

    print("KERNEL_OK")
</pallas_src>

<mosaic_0001>
module attributes {stable_mosaic.version = 11 : i64} {
  func.func @_bottleneck_kernel(%arg0: i32, %arg1: memref<1x16x16x128xf32, #tpu.memory_space<vmem>>, %arg2: memref<128x128xf32, #tpu.memory_space<vmem>>, %arg3: memref<3x384x128xf32, #tpu.memory_space<vmem>>, %arg4: memref<128x128xf32, #tpu.memory_space<vmem>>, %arg5: memref<1x128xf32, #tpu.memory_space<vmem>>, %arg6: memref<1x128xf32, #tpu.memory_space<vmem>>, %arg7: memref<1x128xf32, #tpu.memory_space<vmem>>, %arg8: memref<128x128xf32, #tpu.memory_space<vmem>>, %arg9: memref<1x128xf32, #tpu.memory_space<vmem>>, %arg10: memref<1x16x16x128xf32, #tpu.memory_space<vmem>>) attributes {dimension_semantics = [#tpu.dimension_semantics<parallel>], iteration_bounds = array<i64: 2>, scalar_prefetch = 0 : i64, scratch_operands = 0 : i64, tpu.core_type = #tpu.core_type<tc>, window_params = [{transform_indices = @transform_0, window_bounds = array<i64: 1, 16, 16, 128>}, {pipeline_mode = #tpu.pipeline_mode<synchronous>, transform_indices = @transform_1, window_bounds = array<i64: 128, 128>}, {pipeline_mode = #tpu.pipeline_mode<synchronous>, transform_indices = @transform_2, window_bounds = array<i64: 3, 384, 128>}, {pipeline_mode = #tpu.pipeline_mode<synchronous>, transform_indices = @transform_3, window_bounds = array<i64: 128, 128>}, {pipeline_mode = #tpu.pipeline_mode<synchronous>, transform_indices = @transform_4, window_bounds = array<i64: 1, 128>}, {pipeline_mode = #tpu.pipeline_mode<synchronous>, transform_indices = @transform_5, window_bounds = array<i64: 1, 128>}, {pipeline_mode = #tpu.pipeline_mode<synchronous>, transform_indices = @transform_6, window_bounds = array<i64: 1, 128>}, {pipeline_mode = #tpu.pipeline_mode<synchronous>, transform_indices = @transform_7, window_bounds = array<i64: 128, 128>}, {pipeline_mode = #tpu.pipeline_mode<synchronous>, transform_indices = @transform_8, window_bounds = array<i64: 1, 128>}, {transform_indices = @transform_9, window_bounds = array<i64: 1, 16, 16, 128>}]} {
    %c0 = arith.constant 0 : index
    %c0_0 = arith.constant 0 : index
    %c0_1 = arith.constant 0 : index
    %c0_2 = arith.constant 0 : index
    %0 = vector.load %arg1[%c0, %c0_0, %c0_1, %c0_2] : memref<1x16x16x128xf32, #tpu.memory_space<vmem>>, vector<1x16x16x128xf32>
    %1 = vector.shape_cast %0 : vector<1x16x16x128xf32> to vector<256x128xf32>
    %c0_3 = arith.constant 0 : index
    %c0_4 = arith.constant 0 : index
    %2 = vector.load %arg2[%c0_3, %c0_4] : memref<128x128xf32, #tpu.memory_space<vmem>>, vector<128x128xf32>
    %cst = arith.constant dense<0.000000e+00> : vector<256x128xf32>
    %3 = tpu.matmul %1, %2, %cst {dimension_numbers = #tpu.dot_dimension_numbers<[1], [0], [0], [1], [0, 0, 1, 1], [], []>} : vector<256x128xf32>, vector<128x128xf32>, vector<256x128xf32> -> vector<256x128xf32>
    %c0_5 = arith.constant 0 : index
    %c0_6 = arith.constant 0 : index
    %4 = vector.load %arg5[%c0_5, %c0_6] : memref<1x128xf32, #tpu.memory_space<vmem>>, vector<1x128xf32>
    %5 = vector.broadcast %4 : vector<1x128xf32> to vector<256x128xf32>
    %6 = arith.addf %3, %5 : vector<256x128xf32>
    %cst_7 = arith.constant 0.000000e+00 : f32
    %7 = vector.broadcast %cst_7 : f32 to vector<256x128xf32>
    %8 = arith.maximumf %6, %7 : vector<256x128xf32>
    %9 = vector.shape_cast %8 : vector<256x128xf32> to vector<1x16x16x128xf32>
    %cst_8 = arith.constant 0.000000e+00 : f32
    %10 = vector.broadcast %cst_8 : f32 to vector<1x16x1x128xf32>
    %11 = tpu.concatenate %10, %9, %10 in 2 : vector<1x16x1x128xf32>, vector<1x16x16x128xf32>, vector<1x16x1x128xf32> -> vector<1x16x18x128xf32>
    %cst_9 = arith.constant 0.000000e+00 : f32
    %12 = vector.broadcast %cst_9 : f32 to vector<1x1x18x128xf32>
    %13 = tpu.concatenate %12, %11, %12 in 1 : vector<1x1x18x128xf32>, vector<1x16x18x128xf32>, vector<1x1x18x128xf32> -> vector<1x18x18x128xf32>
    %14 = vector.extract_strided_slice %13 {offsets = [0, 0, 0, 0], sizes = [1, 16, 18, 128], strides = [1, 1, 1, 1]} : vector<1x18x18x128xf32> to vector<1x16x18x128xf32>
    %15 = vector.extract_strided_slice %14 {offsets = [0, 0, 0, 0], sizes = [1, 16, 16, 128], strides = [1, 1, 1, 1]} : vector<1x16x18x128xf32> to vector<1x16x16x128xf32>
    %16 = vector.extract_strided_slice %14 {offsets = [0, 0, 1, 0], sizes = [1, 16, 16, 128], strides = [1, 1, 1, 1]} : vector<1x16x18x128xf32> to vector<1x16x16x128xf32>
    %17 = vector.extract_strided_slice %14 {offsets = [0, 0, 2, 0], sizes = [1, 16, 16, 128], strides = [1, 1, 1, 1]} : vector<1x16x18x128xf32> to vector<1x16x16x128xf32>
    %18 = tpu.concatenate %15, %16, %17 in 3 : vector<1x16x16x128xf32>, vector<1x16x16x128xf32>, vector<1x16x16x128xf32> -> vector<1x16x16x384xf32>
    %19 = vector.shape_cast %18 : vector<1x16x16x384xf32> to vector<256x384xf32>
    %c0_10 = arith.constant 0 : index
    %c0_11 = arith.constant 0 : index
    %c0_12 = arith.constant 0 : index
    %20 = vector.load %arg3[%c0_10, %c0_11, %c0_12] : memref<3x384x128xf32, #tpu.memory_space<vmem>>, vector<1x384x128xf32>
    %21 = vector.shape_cast %20 : vector<1x384x128xf32> to vector<384x128xf32>
    %cst_13 = arith.constant dense<0.000000e+00> : vector<256x128xf32>
    %22 = tpu.matmul %19, %21, %cst_13 {dimension_numbers = #tpu.dot_dimension_numbers<[1], [0], [0], [1], [0, 0, 1, 1], [], []>} : vector<256x384xf32>, vector<384x128xf32>, vector<256x128xf32> -> vector<256x128xf32>
    %23 = vector.extract_strided_slice %13 {offsets = [0, 1, 0, 0], sizes = [1, 16, 18, 128], strides = [1, 1, 1, 1]} : vector<1x18x18x128xf32> to vector<1x16x18x128xf32>
    %24 = vector.extract_strided_slice %23 {offsets = [0, 0, 0, 0], sizes = [1, 16, 16, 128], strides = [1, 1, 1, 1]} : vector<1x16x18x128xf32> to vector<1x16x16x128xf32>
    %25 = vector.extract_strided_slice %23 {offsets = [0, 0, 1, 0], sizes = [1, 16, 16, 128], strides = [1, 1, 1, 1]} : vector<1x16x18x128xf32> to vector<1x16x16x128xf32>
    %26 = vector.extract_strided_slice %23 {offsets = [0, 0, 2, 0], sizes = [1, 16, 16, 128], strides = [1, 1, 1, 1]} : vector<1x16x18x128xf32> to vector<1x16x16x128xf32>
    %27 = tpu.concatenate %24, %25, %26 in 3 : vector<1x16x16x128xf32>, vector<1x16x16x128xf32>, vector<1x16x16x128xf32> -> vector<1x16x16x384xf32>
    %28 = vector.shape_cast %27 : vector<1x16x16x384xf32> to vector<256x384xf32>
    %c1 = arith.constant 1 : index
    %c0_14 = arith.constant 0 : index
    %c0_15 = arith.constant 0 : index
    %29 = vector.load %arg3[%c1, %c0_14, %c0_15] : memref<3x384x128xf32, #tpu.memory_space<vmem>>, vector<1x384x128xf32>
    %30 = vector.shape_cast %29 : vector<1x384x128xf32> to vector<384x128xf32>
    %cst_16 = arith.constant dense<0.000000e+00> : vector<256x128xf32>
    %31 = tpu.matmul %28, %30, %cst_16 {dimension_numbers = #tpu.dot_dimension_numbers<[1], [0], [0], [1], [0, 0, 1, 1], [], []>} : vector<256x384xf32>, vector<384x128xf32>, vector<256x128xf32> -> vector<256x128xf32>
    %32 = arith.addf %22, %31 : vector<256x128xf32>
    %33 = vector.extract_strided_slice %13 {offsets = [0, 2, 0, 0], sizes = [1, 16, 18, 128], strides = [1, 1, 1, 1]} : vector<1x18x18x128xf32> to vector<1x16x18x128xf32>
    %34 = vector.extract_strided_slice %33 {offsets = [0, 0, 0, 0], sizes = [1, 16, 16, 128], strides = [1, 1, 1, 1]} : vector<1x16x18x128xf32> to vector<1x16x16x128xf32>
    %35 = vector.extract_strided_slice %33 {offsets = [0, 0, 1, 0], sizes = [1, 16, 16, 128], strides = [1, 1, 1, 1]} : vector<1x16x18x128xf32> to vector<1x16x16x128xf32>
    %36 = vector.extract_strided_slice %33 {offsets = [0, 0, 2, 0], sizes = [1, 16, 16, 128], strides = [1, 1, 1, 1]} : vector<1x16x18x128xf32> to vector<1x16x16x128xf32>
    %37 = tpu.concatenate %34, %35, %36 in 3 : vector<1x16x16x128xf32>, vector<1x16x16x128xf32>, vector<1x16x16x128xf32> -> vector<1x16x16x384xf32>
    %38 = vector.shape_cast %37 : vector<1x16x16x384xf32> to vector<256x384xf32>
    %c2 = arith.constant 2 : index
    %c0_17 = arith.constant 0 : index
    %c0_18 = arith.constant 0 : index
    %39 = vector.load %arg3[%c2, %c0_17, %c0_18] : memref<3x384x128xf32, #tpu.memory_space<vmem>>, vector<1x384x128xf32>
    %40 = vector.shape_cast %39 : vector<1x384x128xf32> to vector<384x128xf32>
    %cst_19 = arith.constant dense<0.000000e+00> : vector<256x128xf32>
    %41 = tpu.matmul %38, %40, %cst_19 {dimension_numbers = #tpu.dot_dimension_numbers<[1], [0], [0], [1], [0, 0, 1, 1], [], []>} : vector<256x384xf32>, vector<384x128xf32>, vector<256x128xf32> -> vector<256x128xf32>
    %42 = arith.addf %32, %41 : vector<256x128xf32>
    %c0_20 = arith.constant 0 : index
    %c0_21 = arith.constant 0 : index
    %43 = vector.load %arg6[%c0_20, %c0_21] : memref<1x128xf32, #tpu.memory_space<vmem>>, vector<1x128xf32>
    %44 = vector.broadcast %43 : vector<1x128xf32> to vector<256x128xf32>
    %45 = arith.addf %42, %44 : vector<256x128xf32>
    %c0_22 = arith.constant 0 : index
    %c0_23 = arith.constant 0 : index
    %46 = vector.load %arg4[%c0_22, %c0_23] : memref<128x128xf32, #tpu.memory_space<vmem>>, vector<128x128xf32>
    %cst_24 = arith.constant dense<0.000000e+00> : vector<256x128xf32>
    %47 = tpu.matmul %45, %46, %cst_24 {dimension_numbers = #tpu.dot_dimension_numbers<[1], [0], [0], [1], [0, 0, 1, 1], [], []>} : vector<256x128xf32>, vector<128x128xf32>, vector<256x128xf32> -> vector<256x128xf32>
    %c0_25 = arith.constant 0 : index
    %c0_26 = arith.constant 0 : index
    %48 = vector.load %arg7[%c0_25, %c0_26] : memref<1x128xf32, #tpu.memory_space<vmem>>, vector<1x128xf32>
    %49 = vector.broadcast %48 : vector<1x128xf32> to vector<256x128xf32>
    %50 = arith.addf %47, %49 : vector<256x128xf32>
    %51 = vector.shape_cast %0 : vector<1x16x16x128xf32> to vector<256x128xf32>
    %c0_27 = arith.constant 0 : index
    %c0_28 = arith.constant 0 : index
    %52 = vector.load %arg8[%c0_27, %c0_28] : memref<128x128xf32, #tpu.memory_space<vmem>>, vector<128x128xf32>
    %cst_29 = arith.constant dense<0.000000e+00> : vector<256x128xf32>
    %53 = tpu.matmul %51, %52, %cst_29 {dimension_numbers = #tpu.dot_dimension_numbers<[1], [0], [0], [1], [0, 0, 1, 1], [], []>} : vector<256x128xf32>, vector<128x128xf32>, vector<256x128xf32> -> vector<256x128xf32>
    %c0_30 = arith.constant 0 : index
    %c0_31 = arith.constant 0 : index
    %54 = vector.load %arg9[%c0_30, %c0_31] : memref<1x128xf32, #tpu.memory_space<vmem>>, vector<1x128xf32>
    %55 = vector.broadcast %54 : vector<1x128xf32> to vector<256x128xf32>
    %56 = arith.addf %53, %55 : vector<256x128xf32>
    %57 = arith.addf %50, %56 : vector<256x128xf32>
    %cst_32 = arith.constant 0.000000e+00 : f32
    %58 = vector.broadcast %cst_32 : f32 to vector<256x128xf32>
    %59 = arith.maximumf %57, %58 : vector<256x128xf32>
    %60 = vector.shape_cast %59 : vector<256x128xf32> to vector<1x16x16x128xf32>
    %c0_33 = arith.constant 0 : index
    %c0_34 = arith.constant 0 : index
    %c0_35 = arith.constant 0 : index
    %c0_36 = arith.constant 0 : index
    %61 = vector.load %arg10[%c0_33, %c0_34, %c0_35, %c0_36] : memref<1x16x16x128xf32, #tpu.memory_space<vmem>>, vector<1x16x16x128xf32>
    tpu.vector_store %arg10[%c0_33, %c0_34, %c0_35, %c0_36], %60 {strides = array<i32>} : memref<1x16x16x128xf32, #tpu.memory_space<vmem>>, vector<1x16x16x128xf32>,
    return
  }
  func.func @transform_0(%arg0: i32) -> (i32, i32, i32, i32) {
    %c0_i32 = arith.constant 0 : i32
    %c0_i32_0 = arith.constant 0 : i32
    %c0_i32_1 = arith.constant 0 : i32
    %c0_i32_2 = arith.constant 0 : i32
    return %arg0, %c0_i32, %c0_i32_0, %c0_i32_1 : i32, i32, i32, i32
  }
  func.func @transform_1(%arg0: i32) -> (i32, i32) {
    %c0_i32 = arith.constant 0 : i32
    %c0_i32_0 = arith.constant 0 : i32
    %c0_i32_1 = arith.constant 0 : i32
    return %c0_i32, %c0_i32_0 : i32, i32
  }
  func.func @transform_2(%arg0: i32) -> (i32, i32, i32) {
    %c0_i32 = arith.constant 0 : i32
    %c0_i32_0 = arith.constant 0 : i32
    %c0_i32_1 = arith.constant 0 : i32
    %c0_i32_2 = arith.constant 0 : i32
    return %c0_i32, %c0_i32_0, %c0_i32_1 : i32, i32, i32
  }
  func.func @transform_3(%arg0: i32) -> (i32, i32) {
    %c0_i32 = arith.constant 0 : i32
    %c0_i32_0 = arith.constant 0 : i32
    %c0_i32_1 = arith.constant 0 : i32
    return %c0_i32, %c0_i32_0 : i32, i32
  }
  func.func @transform_4(%arg0: i32) -> (i32, i32) {
    %c0_i32 = arith.constant 0 : i32
    %c0_i32_0 = arith.constant 0 : i32
    %c0_i32_1 = arith.constant 0 : i32
    return %c0_i32, %c0_i32_0 : i32, i32
  }
  func.func @transform_5(%arg0: i32) -> (i32, i32) {
    %c0_i32 = arith.constant 0 : i32
    %c0_i32_0 = arith.constant 0 : i32
    %c0_i32_1 = arith.constant 0 : i32
    return %c0_i32, %c0_i32_0 : i32, i32
  }
  func.func @transform_6(%arg0: i32) -> (i32, i32) {
    %c0_i32 = arith.constant 0 : i32
    %c0_i32_0 = arith.constant 0 : i32
    %c0_i32_1 = arith.constant 0 : i32
    return %c0_i32, %c0_i32_0 : i32, i32
  }
  func.func @transform_7(%arg0: i32) -> (i32, i32) {
    %c0_i32 = arith.constant 0 : i32
    %c0_i32_0 = arith.constant 0 : i32
    %c0_i32_1 = arith.constant 0 : i32
    return %c0_i32, %c0_i32_0 : i32, i32
  }
  func.func @transform_8(%arg0: i32) -> (i32, i32) {
    %c0_i32 = arith.constant 0 : i32
    %c0_i32_0 = arith.constant 0 : i32
    %c0_i32_1 = arith.constant 0 : i32
    return %c0_i32, %c0_i32_0 : i32, i32
  }
  func.func @transform_9(%arg0: i32) -> (i32, i32, i32, i32) {
    %c0_i32 = arith.constant 0 : i32
    %c0_i32_0 = arith.constant 0 : i32
    %c0_i32_1 = arith.constant 0 : i32
    %c0_i32_2 = arith.constant 0 : i32
    return %arg0, %c0_i32, %c0_i32_0, %c0_i32_1 : i32, i32, i32, i32
  }
}

</mosaic_0001>

<llo_original>
// kernel: tpu_custom_call.1
$region0: #{tpu_custom_call.1}
  #allocation0 [shape = 'u32[]', space=smem, size = 0x4, offset = 0x4, fixed_abs, tag = 'smem constant byte address 0x4 - core index']
  #allocation1 [shape = 'u32[72,128]{1,0:T(1,128)}', space=vmem, size = 0x9000, scoped, tag = 'internal scratch']
  %s0 = inlined_call_operand.hbm [shape: f32[2,16,16,128], index: 0, kind: input, shape index: {}]
  %s1 = inlined_call_operand.hbm [shape: f32[128,128], index: 1, kind: input, shape index: {}]
  %s2 = inlined_call_operand.hbm [shape: f32[3,384,128], index: 2, kind: input, shape index: {}]
  %s3 = inlined_call_operand.hbm [shape: f32[128,128], index: 3, kind: input, shape index: {}]
  %s4 = inlined_call_operand.vmem [shape: f32[1,128], index: 4, kind: input, shape index: {}]
  %s5 = inlined_call_operand.vmem [shape: f32[1,128], index: 5, kind: input, shape index: {}]
  %s6 = inlined_call_operand.vmem [shape: f32[1,128], index: 6, kind: input, shape index: {}]
  %s7 = inlined_call_operand.hbm [shape: f32[128,128], index: 7, kind: input, shape index: {}]
  %s8 = inlined_call_operand.vmem [shape: f32[1,128], index: 8, kind: input, shape index: {}]
  %s9 = inlined_call_operand.hbm [shape: f32[2,16,16,128], index: 9, kind: output, shape index: {}]
  %s10 = sld [smem:[#allocation0]]
  $region89: #{tpu_custom_call.1} parent=0
    _
  %s12 = ssub.s32 1, %s10
  %s13 = scalar_select 0, %s12, %s10
  $region1: #{tpu_custom_call.1} parent=0
    #allocation2 [shape = 'u8[262144]{0}', space=vmem, size = 0x40000, scoped, tag = 'input window, operand 0']
    #allocation3 [shape = 's32[2]{0}', space=sflag, size = 0x8, scoped, tag = 'scoped memory for tpu_custom_call.1']
    #allocation4 [shape = 's32[2]{0}', space=sflag, size = 0x8, scoped, tag = 'scoped memory for tpu_custom_call.1']
    #allocation5 [shape = 'u8[65536]{0}', space=vmem, size = 0x10000, scoped, tag = 'input window, operand 1, single buffered']
    #allocation6 [shape = 's32[1]{0}', space=sflag, size = 0x4, scoped, tag = 'scoped memory for tpu_custom_call.1']
    #allocation7 [shape = 'u8[589824]{0}', space=vmem, size = 0x90000, scoped, tag = 'input window, operand 2, single buffered']
    #allocation8 [shape = 'u8[65536]{0}', space=vmem, size = 0x10000, scoped, tag = 'input window, operand 3, single buffered']
    #allocation9 [shape = 's32[1]{0}', space=sflag, size = 0x4, scoped, tag = 'scoped memory for tpu_custom_call.1']
    #allocation10 [shape = 'u8[65536]{0}', space=vmem, size = 0x10000, scoped, tag = 'input window, operand 7, single buffered']
    #allocation11 [shape = 'u8[262144]{0}', space=vmem, size = 0x40000, scoped, tag = 'output window, operand 0']
    %14 = vsyncpa [#allocation3], 0
    %s15 = scalar_lea.sflag [#allocation3], 1
    %16 = vsyncpa %s15, 0
    %17 = vsyncpa [#allocation6], 0
    %18 = vsyncpa [#allocation9], 0
    %19 = vsyncpa [#allocation4], 0
    %s20 = scalar_lea.sflag [#allocation4], 1
    %21 = vsyncpa %s20, 0
    loop: start=0, step=1, limit=4
    $region2: #{tpu_custom_call.1} parent=1 // loop_pre_header
      _
    $region3: #{tpu_custom_call.1} parent=1 // loop_header
      %s23 = sphi 0, %s27
      %p24 = scmp.ge.s32.totalorder %s23, 4
      %s33 = sphi 0, %s35
      %s36 = sphi 0, %s33
      %s37 = sphi 0, %s36
      %s53 = sphi 0, %s37
      %s57 = sphi 0, %s57
      %s59 = sphi 0, %s57
      %s60 = sphi 0, %s59
      %s74 = sphi 0, %s60
      %s78 = sphi 0, %s78
      %s80 = sphi 0, %s78
      %s81 = sphi 0, %s80
      %s95 = sphi 0, %s81
      %s99 = sphi 0, %s99
      %s101 = sphi 0, %s99
      %s102 = sphi 0, %s101
      %s116 = sphi 0, %s102
      %s120 = sphi 0, %s120
      %s122 = sphi 0, %s120
      %s123 = sphi 0, %s122
      %s137 = sphi 0, %s123
      %s141 = sphi 0, %s141
      %s143 = sphi 0, %s141
      %s144 = sphi 0, %s143
      %s158 = sphi 0, %s144
      %s162 = sphi 0, %s162
      %s164 = sphi 0, %s162
      %s165 = sphi 0, %s164
      %s179 = sphi 0, %s165
      %s183 = sphi 0, %s183
      %s185 = sphi 0, %s183
      %s186 = sphi 0, %s185
      %s200 = sphi 0, %s186
      %s204 = sphi 0, %s204
      %s206 = sphi 0, %s204
      %s207 = sphi 0, %s206
      %s221 = sphi 0, %s207
      %s227 = sphi 0, %s229
      %s230 = sphi 0, %s227
      %s231 = sphi 0, %s230
      %s247 = sphi 0, %s231
    $region4: #{tpu_custom_call.1} parent=1 // loop_header_branch
      %26 = sbr.rel (%p24) target = $region8
    $region5: #{tpu_custom_call.1} parent=1 // loop_body
      %s28 = ssub.s32 %s23, 1
      %s29 = ssub.s32 %s23, 2
      %s30 = sadd.s32 %s23, 1
      %s31 = ssub.s32 %s23, %s30
      %p32 = scmp.eq.s32.totalorder %s31, 0
      %s34 = sadd.s32 %s33, 1
      %s35 = scalar_select %p32, %s33, %s34
      %p38 = pneg %p32
      %p39 = scmp.eq.s32.totalorder %s23, 1
      %p40 = por %p38, %p39
      %p41 = scmp.ne.s32.totalorder %s33, %s36
      %p42 = scmp.eq.s32.totalorder %s23, 0
      %p43 = por %p41, %p42
      %p44 = scmp.ne.s32.totalorder %s33, %s36
      %p45 = scmp.eq.s32.totalorder %s28, 1
      %p46 = por %p44, %p45
      %p47 = scmp.ne.s32.totalorder %s36, %s37
      %p48 = scmp.eq.s32.totalorder %s28, 0
      %p49 = por %p47, %p48
      %p50 = scmp.ne.s32.totalorder %s36, %s37
      %p51 = scmp.eq.s32.totalorder %s29, 1
      %p52 = por %p50, %p51
      %p54 = scmp.ne.s32.totalorder %s37, %s53
      %p55 = scmp.eq.s32.totalorder %s29, 0
      %p56 = por %p54, %p55
      %s58 = sadd.s32 %s57, 1
      %p61 = scmp.eq.s32.totalorder %s23, 1
      %p62 = scmp.ne.s32.totalorder %s57, %s59
      %p63 = scmp.eq.s32.totalorder %s23, 0
      %p64 = por %p62, %p63
      %p65 = scmp.ne.s32.totalorder %s57, %s59
      %p66 = scmp.eq.s32.totalorder %s28, 1
      %p67 = por %p65, %p66
      %p68 = scmp.ne.s32.totalorder %s59, %s60
      %p69 = scmp.eq.s32.totalorder %s28, 0
      %p70 = por %p68, %p69
      %p71 = scmp.ne.s32.totalorder %s59, %s60
      %p72 = scmp.eq.s32.totalorder %s29, 1
      %p73 = por %p71, %p72
      %p75 = scmp.ne.s32.totalorder %s60, %s74
      %p76 = scmp.eq.s32.totalorder %s29, 0
      %p77 = por %p75, %p76
      %s79 = sadd.s32 %s78, 1
      %p82 = scmp.eq.s32.totalorder %s23, 1
      %p83 = scmp.ne.s32.totalorder %s78, %s80
      %p84 = scmp.eq.s32.totalorder %s23, 0
      %p85 = por %p83, %p84
      %p86 = scmp.ne.s32.totalorder %s78, %s80
      %p87 = scmp.eq.s32.totalorder %s28, 1
      %p88 = por %p86, %p87
      %p89 = scmp.ne.s32.totalorder %s80, %s81
      %p90 = scmp.eq.s32.totalorder %s28, 0
      %p91 = por %p89, %p90
      %p92 = scmp.ne.s32.totalorder %s80, %s81
      %p93 = scmp.eq.s32.totalorder %s29, 1
      %p94 = por %p92, %p93
      %p96 = scmp.ne.s32.totalorder %s81, %s95
      %p97 = scmp.eq.s32.totalorder %s29, 0
      %p98 = por %p96, %p97
      %s100 = sadd.s32 %s99, 1
      %p103 = scmp.eq.s32.totalorder %s23, 1
      %p104 = scmp.ne.s32.totalorder %s99, %s101
      %p105 = scmp.eq.s32.totalorder %s23, 0
      %p106 = por %p104, %p105
      %p107 = scmp.ne.s32.totalorder %s99, %s101
      %p108 = scmp.eq.s32.totalorder %s28, 1
      %p109 = por %p107, %p108
      %p110 = scmp.ne.s32.totalorder %s101, %s102
      %p111 = scmp.eq.s32.totalorder %s28, 0
      %p112 = por %p110, %p111
      %p113 = scmp.ne.s32.totalorder %s101, %s102
      %p114 = scmp.eq.s32.totalorder %s29, 1
      %p115 = por %p113, %p114
      %p117 = scmp.ne.s32.totalorder %s102, %s116
      %p118 = scmp.eq.s32.totalorder %s29, 0
      %p119 = por %p117, %p118
      %s121 = sadd.s32 %s120, 1
      %p124 = scmp.eq.s32.totalorder %s23, 1
      %p125 = scmp.ne.s32.totalorder %s120, %s122
      %p126 = scmp.eq.s32.totalorder %s23, 0
      %p127 = por %p125, %p126
      %p128 = scmp.ne.s32.totalorder %s120, %s122
      %p129 = scmp.eq.s32.totalorder %s28, 1
      %p130 = por %p128, %p129
      %p131 = scmp.ne.s32.totalorder %s122, %s123
      %p132 = scmp.eq.s32.totalorder %s28, 0
      %p133 = por %p131, %p132
      %p134 = scmp.ne.s32.totalorder %s122, %s123
      %p135 = scmp.eq.s32.totalorder %s29, 1
      %p136 = por %p134, %p135
      %p138 = scmp.ne.s32.totalorder %s123, %s137
      %p139 = scmp.eq.s32.totalorder %s29, 0
      %p140 = por %p138, %p139
      %s142 = sadd.s32 %s141, 1
      %p145 = scmp.eq.s32.totalorder %s23, 1
      %p146 = scmp.ne.s32.totalorder %s141, %s143
      %p147 = scmp.eq.s32.totalorder %s23, 0
      %p148 = por %p146, %p147
      %p149 = scmp.ne.s32.totalorder %s141, %s143
      %p150 = scmp.eq.s32.totalorder %s28, 1
      %p151 = por %p149, %p150
      %p152 = scmp.ne.s32.totalorder %s143, %s144
      %p153 = scmp.eq.s32.totalorder %s28, 0
      %p154 = por %p152, %p153
      %p155 = scmp.ne.s32.totalorder %s143, %s144
      %p156 = scmp.eq.s32.totalorder %s29, 1
      %p157 = por %p155, %p156
      %p159 = scmp.ne.s32.totalorder %s144, %s158
      %p160 = scmp.eq.s32.totalorder %s29, 0
      %p161 = por %p159, %p160
      %s163 = sadd.s32 %s162, 1
      %p166 = scmp.eq.s32.totalorder %s23, 1
      %p167 = scmp.ne.s32.totalorder %s162, %s164
      %p168 = scmp.eq.s32.totalorder %s23, 0
      %p169 = por %p167, %p168
      %p170 = scmp.ne.s32.totalorder %s162, %s164
      %p171 = scmp.eq.s32.totalorder %s28, 1
      %p172 = por %p170, %p171
      %p173 = scmp.ne.s32.totalorder %s164, %s165
      %p174 = scmp.eq.s32.totalorder %s28, 0
      %p175 = por %p173, %p174
      %p176 = scmp.ne.s32.totalorder %s164, %s165
      %p177 = scmp.eq.s32.totalorder %s29, 1
      %p178 = por %p176, %p177
      %p180 = scmp.ne.s32.totalorder %s165, %s179
      %p181 = scmp.eq.s32.totalorder %s29, 0
      %p182 = por %p180, %p181
      %s184 = sadd.s32 %s183, 1
      %p187 = scmp.eq.s32.totalorder %s23, 1
      %p188 = scmp.ne.s32.totalorder %s183, %s185
      %p189 = scmp.eq.s32.totalorder %s23, 0
      %p190 = por %p188, %p189
      %p191 = scmp.ne.s32.totalorder %s183, %s185
      %p192 = scmp.eq.s32.totalorder %s28, 1
      %p193 = por %p191, %p192
      %p194 = scmp.ne.s32.totalorder %s185, %s186
      %p195 = scmp.eq.s32.totalorder %s28, 0
      %p196 = por %p194, %p195
      %p197 = scmp.ne.s32.totalorder %s185, %s186
      %p198 = scmp.eq.s32.totalorder %s29, 1
      %p199 = por %p197, %p198
      %p201 = scmp.ne.s32.totalorder %s186, %s200
      %p202 = scmp.eq.s32.totalorder %s29, 0
      %p203 = por %p201, %p202
      %s205 = sadd.s32 %s204, 1
      %p208 = scmp.eq.s32.totalorder %s23, 1
      %p209 = scmp.ne.s32.totalorder %s204, %s206
      %p210 = scmp.eq.s32.totalorder %s23, 0
      %p211 = por %p209, %p210
      %p212 = scmp.ne.s32.totalorder %s204, %s206
      %p213 = scmp.eq.s32.totalorder %s28, 1
      %p214 = por %p212, %p213
      %p215 = scmp.ne.s32.totalorder %s206, %s207
      %p216 = scmp.eq.s32.totalorder %s28, 0
      %p217 = por %p215, %p216
      %p218 = scmp.ne.s32.totalorder %s206, %s207
      %p219 = scmp.eq.s32.totalorder %s29, 1
      %p220 = por %p218, %p219
      %p222 = scmp.ne.s32.totalorder %s207, %s221
      %p223 = scmp.eq.s32.totalorder %s29, 0
      %p224 = por %p222, %p223
      %s225 = ssub.s32 %s23, %s30
      %p226 = scmp.eq.s32.totalorder %s225, 0
      %s228 = sadd.s32 %s227, 1
      %s229 = scalar_select %p226, %s227, %s228
      %p232 = pneg %p226
      %p233 = scmp.eq.s32.totalorder %s23, 1
      %p234 = por %p232, %p233
      %p235 = scmp.ne.s32.totalorder %s227, %s230
      %p236 = scmp.eq.s32.totalorder %s23, 0
      %p237 = por %p235, %p236
      %p238 = scmp.ne.s32.totalorder %s227, %s230
      %p239 = scmp.eq.s32.totalorder %s28, 1
      %p240 = por %p238, %p239
      %p241 = scmp.ne.s32.totalorder %s230, %s231
      %p242 = scmp.eq.s32.totalorder %s28, 0
      %p243 = por %p241, %p242
      %p244 = scmp.ne.s32.totalorder %s230, %s231
      %p245 = scmp.eq.s32.totalorder %s29, 1
      %p246 = por %p244, %p245
      %p248 = scmp.ne.s32.totalorder %s231, %s247
      %p249 = scmp.eq.s32.totalorder %s29, 0
      %p250 = por %p248, %p249
      %p251 = scmp.le.s32.totalorder 1, %s23
      %p252 = scmp.lt.s32.totalorder %s23, 3
      %p253 = pnand %p251, %p252
      %p254 = pneg %p253
      // Predicated region
      $region9: #{tpu_custom_call.1} parent=5 // pred_check
        _
      $region10: #{tpu_custom_call.1} parent=5 // pred_check_branch
        %256 = sbr.rel (%p253) target = $region12
      $region11: #{tpu_custom_call.1} parent=5 // pred_region
        %s257 = ssub.s32 %s23, 1
        // Predicated region
        $region13: #{tpu_custom_call.1} parent=11 // pred_check
          %p258 = pneg %p70
        $region14: #{tpu_custom_call.1} parent=11 // pred_check_branch
          %260 = sbr.rel (%p258) target = $region16
        $region15: #{tpu_custom_call.1} parent=11 // pred_region
          %262 = vsyncadd [#allocation6], 0
          %s263 = sshll.u32 %s1, 4
          %s264 = int_to_ptr.hbm [resolvable:$true] %s263
          %s265 = sshll.u32 [#allocation5], 4
          %s266 = int_to_ptr.vmem [resolvable:$true] %s265
          %271 = dma.hbm_to_vmem [thread:$0]  %s264, 2048, %s266, [#allocation6], 128, 128, 8
        $region16: #{tpu_custom_call.1} parent=11 // pred_fallthru
          _
        // Predicated region
        $region17: #{tpu_custom_call.1} parent=11 // pred_check
          %p272 = pneg %p91
        $region18: #{tpu_custom_call.1} parent=11 // pred_check_branch
          %274 = sbr.rel (%p272) target = $region20
        $region19: #{tpu_custom_call.1} parent=11 // pred_region
          %276 = vsyncadd [#allocation6], 0
          %s277 = sshll.u32 %s2, 4
          %s278 = int_to_ptr.hbm [resolvable:$true] %s277
          %s279 = sshll.u32 [#allocation7], 4
          %s280 = int_to_ptr.vmem [resolvable:$true] %s279
          %285 = dma.hbm_to_vmem [thread:$0]  %s278, 18432, %s280, [#allocation6], 128, 128, 8
        $region20: #{tpu_custom_call.1} parent=11 // pred_fallthru
          _
        // Predicated region
        $region21: #{tpu_custom_call.1} parent=11 // pred_check
          %p286 = pneg %p112
        $region22: #{tpu_custom_call.1} parent=11 // pred_check_branch
          %288 = sbr.rel (%p286) target = $region24
        $region23: #{tpu_custom_call.1} parent=11 // pred_region
          %290 = vsyncadd [#allocation9], 0
          %s291 = sshll.u32 %s3, 4
          %s292 = int_to_ptr.hbm [resolvable:$true] %s291
          %s293 = sshll.u32 [#allocation8], 4
          %s294 = int_to_ptr.vmem [resolvable:$true] %s293
          %299 = dma.hbm_to_vmem [thread:$0]  %s292, 2048, %s294, [#allocation9], 128, 128, 8
        $region24: #{tpu_custom_call.1} parent=11 // pred_fallthru
          _
        // Predicated region
        $region25: #{tpu_custom_call.1} parent=11 // pred_check
          %p300 = pneg %p133
        $region26: #{tpu_custom_call.1} parent=11 // pred_check_branch
          %302 = sbr.rel (%p300) target = $region28
        $region27: #{tpu_custom_call.1} parent=11 // pred_region
          _
        $region28: #{tpu_custom_call.1} parent=11 // pred_fallthru
          _
        // Predicated region
        $region29: #{tpu_custom_call.1} parent=11 // pred_check
          %p303 = pneg %p154
        $region30: #{tpu_custom_call.1} parent=11 // pred_check_branch
          %305 = sbr.rel (%p303) target = $region32
        $region31: #{tpu_custom_call.1} parent=11 // pred_region
          _
        $region32: #{tpu_custom_call.1} parent=11 // pred_fallthru
          _
        // Predicated region
        $region33: #{tpu_custom_call.1} parent=11 // pred_check
          %p306 = pneg %p175
        $region34: #{tpu_custom_call.1} parent=11 // pred_check_branch
          %308 = sbr.rel (%p306) target = $region36
        $region35: #{tpu_custom_call.1} parent=11 // pred_region
          _
        $region36: #{tpu_custom_call.1} parent=11 // pred_fallthru
          _
        // Predicated region
        $region37: #{tpu_custom_call.1} parent=11 // pred_check
          %p309 = pneg %p196
        $region38: #{tpu_custom_call.1} parent=11 // pred_check_branch
          %311 = sbr.rel (%p309) target = $region40
        $region39: #{tpu_custom_call.1} parent=11 // pred_region
          %313 = vsyncadd [#allocation9], 0
          %s314 = sshll.u32 %s7, 4
          %s315 = int_to_ptr.hbm [resolvable:$true] %s314
          %s316 = sshll.u32 [#allocation10], 4
          %s317 = int_to_ptr.vmem [resolvable:$true] %s316
          %322 = dma.hbm_to_vmem [thread:$0]  %s315, 2048, %s317, [#allocation9], 128, 128, 8
        $region40: #{tpu_custom_call.1} parent=11 // pred_fallthru
          _
        // Predicated region
        $region41: #{tpu_custom_call.1} parent=11 // pred_check
          %p323 = pneg %p217
        $region42: #{tpu_custom_call.1} parent=11 // pred_check_branch
          %325 = sbr.rel (%p323) target = $region44
        $region43: #{tpu_custom_call.1} parent=11 // pred_region
          _
        $region44: #{tpu_custom_call.1} parent=11 // pred_fallthru
          _
      $region12: #{tpu_custom_call.1} parent=5 // pred_fallthru
        _
      %p326 = scmp.lt.s32.totalorder %s23, 2
      // Predicated region
      $region45: #{tpu_custom_call.1} parent=5 // pred_check
        %p327 = pneg %p326
      $region46: #{tpu_custom_call.1} parent=5 // pred_check_branch
        %329 = sbr.rel (%p327) target = $region48
      $region47: #{tpu_custom_call.1} parent=5 // pred_region
        // Predicated region
        $region49: #{tpu_custom_call.1} parent=47 // pred_check
          %p330 = pneg %p43
        $region50: #{tpu_custom_call.1} parent=47 // pred_check_branch
          %332 = sbr.rel (%p330) target = $region52
        $region51: #{tpu_custom_call.1} parent=47 // pred_region
          %s333 = sand.u32 %s33, 1
          %s334 = scalar_lea.sflag [#allocation3], %s333
          %s335 = sand.u32 %s33, 1
          %s336 = smul.addr %s335, 256
          %s337 = scalar_lea.vmem [#allocation2], %s336
          %339 = vsyncadd %s334, 0
          %s340 = smul.addr %s23, 32
          %s341 = smul.addr %s340, 8
          %s342 = scalar_lea.hbm %s0, %s341
          %s343 = sshll.u32 %s342, 4
          %s344 = int_to_ptr.hbm [resolvable:$true] %s343
          %s345 = sshll.u32 %s337, 4
          %s346 = int_to_ptr.vmem [resolvable:$true] %s345
          %351 = dma.hbm_to_vmem [thread:$0]  %s344, 4096, %s346, %s334, 128, 128, 8
        $region52: #{tpu_custom_call.1} parent=47 // pred_fallthru
          _
      $region48: #{tpu_custom_call.1} parent=5 // pred_fallthru
        _
      %p352 = scmp.le.s32.totalorder 1, %s23
      %p353 = scmp.lt.s32.totalorder %s23, 3
      %p354 = pnand %p352, %p353
      %p355 = pneg %p354
      // Predicated region
      $region53: #{tpu_custom_call.1} parent=5 // pred_check
        _
      $region54: #{tpu_custom_call.1} parent=5 // pred_check_branch
        %357 = sbr.rel (%p354) target = $region56
      $region55: #{tpu_custom_call.1} parent=5 // pred_region
        %s358 = ssub.s32 %s23, 1
        %s359 = sand.u32 %s36, 1
        %s360 = scalar_lea.sflag [#allocation3], %s359
        %s361 = sand.u32 %s36, 1
        %s362 = smul.addr %s361, 256
        %s363 = scalar_lea.vmem [#allocation2], %s362
        // Predicated region
        $region57: #{tpu_custom_call.1} parent=55 // pred_check
          %p364 = pneg %p49
        $region58: #{tpu_custom_call.1} parent=55 // pred_check_branch
          %366 = sbr.rel (%p364) target = $region60
        $region59: #{tpu_custom_call.1} parent=55 // pred_region
          %368 = dma.done %s360, 4096
        $region60: #{tpu_custom_call.1} parent=55 // pred_fallthru
          _
        // Predicated region
        $region61: #{tpu_custom_call.1} parent=55 // pred_check
          %p369 = pneg %p70
        $region62: #{tpu_custom_call.1} parent=55 // pred_check_branch
          %371 = sbr.rel (%p369) target = $region64
        $region63: #{tpu_custom_call.1} parent=55 // pred_region
          %373 = dma.done [#allocation6], 2048
        $region64: #{tpu_custom_call.1} parent=55 // pred_fallthru
          _
        // Predicated region
        $region65: #{tpu_custom_call.1} parent=55 // pred_check
          %p374 = pneg %p91
        $region66: #{tpu_custom_call.1} parent=55 // pred_check_branch
          %376 = sbr.rel (%p374) target = $region68
        $region67: #{tpu_custom_call.1} parent=55 // pred_region
          %378 = dma.done [#allocation6], 18432
        $region68: #{tpu_custom_call.1} parent=55 // pred_fallthru
          _
        // Predicated region
        $region69: #{tpu_custom_call.1} parent=55 // pred_check
          %p379 = pneg %p112
        $region70: #{tpu_custom_call.1} parent=55 // pred_check_branch
          %381 = sbr.rel (%p379) target = $region72
        $region71: #{tpu_custom_call.1} parent=55 // pred_region
          %383 = dma.done [#allocation9], 2048
        $region72: #{tpu_custom_call.1} parent=55 // pred_fallthru
          _
        // Predicated region
        $region73: #{tpu_custom_call.1} parent=55 // pred_check
          %p384 = pneg %p196
        $region74: #{tpu_custom_call.1} parent=55 // pred_check_branch
          %386 = sbr.rel (%p384) target = $region76
        $region75: #{tpu_custom_call.1} parent=55 // pred_region
          %388 = dma.done [#allocation9], 2048
        $region76: #{tpu_custom_call.1} parent=55 // pred_fallthru
          _
        %s389 = sand.u32 %s36, 1
        %s390 = scalar_lea.sflag [#allocation3], %s389
        %s391 = sand.u32 %s36, 1
        %s392 = smul.addr %s391, 256
        %s393 = scalar_lea.vmem [#allocation2], %s392
        %p394 = pneg %p49
        %p395 = pneg %p46
        %p396 = pneg %p70
        %p397 = pneg %p67
        %p398 = pneg %p91
        %p399 = pneg %p88
        %p400 = pneg %p112
        %p401 = pneg %p109
        %p402 = pneg %p133
        %p403 = pneg %p130
        %p404 = pneg %p154
        %p405 = pneg %p151
        %p406 = pneg %p175
        %p407 = pneg %p172
        %p408 = pneg %p196
        %p409 = pneg %p193
        %p410 = pneg %p217
        %p411 = pneg %p214
        %p412 = pneg %p243
        %p413 = pneg %p240
        %s414 = sand.u32 %s230, 1
        %s415 = scalar_lea.sflag [#allocation4], %s414
        %s416 = sand.u32 %s230, 1
        %s417 = smul.addr %s416, 256
        %s418 = scalar_lea.vmem [#allocation11], %s417
        %v419 = vld [vmem:[%s363] sm:$0xff]
        %v420 = vld [vmem:[%s363 + $0x8] sm:$0xff]
        %v421 = vld [vmem:[%s363 + $0x10] sm:$0xff]
        %v422 = vld [vmem:[%s363 + $0x18] sm:$0xff]
        %v423 = vld [vmem:[%s363 + $0x20] sm:$0xff]
        %v424 = vld [vmem:[%s363 + $0x28] sm:$0xff]
        %v425 = vld [vmem:[%s363 + $0x30] sm:$0xff]
        %v426 = vld [vmem:[%s363 + $0x38] sm:$0xff]
        %v427 = vld [vmem:[%s363 + $0x40] sm:$0xff]
        %v428 = vld [vmem:[%s363 + $0x48] sm:$0xff]
        %v429 = vld [vmem:[%s363 + $0x50] sm:$0xff]
        %v430 = vld [vmem:[%s363 + $0x58] sm:$0xff]
        %v431 = vld [vmem:[%s363 + $0x60] sm:$0xff]
        %v432 = vld [vmem:[%s363 + $0x68] sm:$0xff]
        %v433 = vld [vmem:[%s363 + $0x70] sm:$0xff]
        %v434 = vld [vmem:[%s363 + $0x78] sm:$0xff]
        %v435 = vld [vmem:[%s363 + $0x80] sm:$0xff]
        %v436 = vld [vmem:[%s363 + $0x88] sm:$0xff]
        %v437 = vld [vmem:[%s363 + $0x90] sm:$0xff]
        %v438 = vld [vmem:[%s363 + $0x98] sm:$0xff]
        %v439 = vld [vmem:[%s363 + $0xa0] sm:$0xff]
        %v440 = vld [vmem:[%s363 + $0xa8] sm:$0xff]
        %v441 = vld [vmem:[%s363 + $0xb0] sm:$0xff]
        %v442 = vld [vmem:[%s363 + $0xb8] sm:$0xff]
        %v443 = vld [vmem:[%s363 + $0xc0] sm:$0xff]
        %v444 = vld [vmem:[%s363 + $0xc8] sm:$0xff]
        %v445 = vld [vmem:[%s363 + $0xd0] sm:$0xff]
        %v446 = vld [vmem:[%s363 + $0xd8] sm:$0xff]
        %v447 = vld [vmem:[%s363 + $0xe0] sm:$0xff]
        %v448 = vld [vmem:[%s363 + $0xe8] sm:$0xff]
        %v449 = vld [vmem:[%s363 + $0xf0] sm:$0xff]
        %v450 = vld [vmem:[%s363 + $0xf8] sm:$0xff]
        %v451 = vld [vmem:[#allocation5] sm:$0xff]
        %v452 = vld [vmem:[#allocation5 + $0x8] sm:$0xff]
        %v453 = vld [vmem:[#allocation5 + $0x10] sm:$0xff]
        %v454 = vld [vmem:[#allocation5 + $0x18] sm:$0xff]
        %v455 = vld [vmem:[#allocation5 + $0x20] sm:$0xff]
        %v456 = vld [vmem:[#allocation5 + $0x28] sm:$0xff]
        %v457 = vld [vmem:[#allocation5 + $0x30] sm:$0xff]
        %v458 = vld [vmem:[#allocation5 + $0x38] sm:$0xff]
        %v459 = vld [vmem:[#allocation5 + $0x40] sm:$0xff]
        %v460 = vld [vmem:[#allocation5 + $0x48] sm:$0xff]
        %v461 = vld [vmem:[#allocation5 + $0x50] sm:$0xff]
        %v462 = vld [vmem:[#allocation5 + $0x58] sm:$0xff]
        %v463 = vld [vmem:[#allocation5 + $0x60] sm:$0xff]
        %v464 = vld [vmem:[#allocation5 + $0x68] sm:$0xff]
        %v465 = vld [vmem:[#allocation5 + $0x70] sm:$0xff]
        %v466 = vld [vmem:[#allocation5 + $0x78] sm:$0xff]
        %v467 = vld [vmem:[%s4] sm:$0x1]
        %v469 = vperm.slane %v467, 0
        %471 = vmatpush.msra.mxu0 %v466
        %472 = vmatpush.msra.mxu0 %v465
        %473 = vmatpush.msra.mxu0 %v464
        %474 = vmatpush.msra.mxu0 %v463
        %475 = vmatpush.msra.mxu0 %v462
        %476 = vmatpush.msra.mxu0 %v461
        %477 = vmatpush.msra.mxu0 %v460
        %478 = vmatpush.msra.mxu0 %v459
        %479 = vmatpush.msra.mxu0 %v458
        %480 = vmatpush.msra.mxu0 %v457
        %481 = vmatpush.msra.mxu0 %v456
        %482 = vmatpush.msra.mxu0 %v455
        %483 = vmatpush.msra.mxu0 %v454
        %484 = vmatpush.msra.mxu0 %v453
        %485 = vmatpush.msra.mxu0 %v452
        %486 = vmatpush.msra.mxu0 %v451
        %487 = vmatmul.f32.gmra.mxu0 %v419
        %v488 = vpop.f32.mrf.mxu0
        %v489 = vadd.f32 %v469, %v488
        %490 = vmatmul.f32.gmra.mxu0 %v420
        %v491 = vpop.f32.mrf.mxu0
        %v492 = vadd.f32 %v469, %v491
        %493 = vmatmul.f32.gmra.mxu0 %v421
        %v494 = vpop.f32.mrf.mxu0
        %v495 = vadd.f32 %v469, %v494
        %496 = vmatmul.f32.gmra.mxu0 %v422
        %v497 = vpop.f32.mrf.mxu0
        %v498 = vadd.f32 %v469, %v497
        %499 = vmatmul.f32.gmra.mxu0 %v423
        %v500 = vpop.f32.mrf.mxu0
        %v501 = vadd.f32 %v469, %v500
        %502 = vmatmul.f32.gmra.mxu0 %v424
        %v503 = vpop.f32.mrf.mxu0
        %v504 = vadd.f32 %v469, %v503
        %505 = vmatmul.f32.gmra.mxu0 %v425
        %v506 = vpop.f32.mrf.mxu0
        %v507 = vadd.f32 %v469, %v506
        %508 = vmatmul.f32.gmra.mxu0 %v426
        %v509 = vpop.f32.mrf.mxu0
        %v510 = vadd.f32 %v469, %v509
        %511 = vmatmul.f32.gmra.mxu0 %v427
        %v512 = vpop.f32.mrf.mxu0
        %v513 = vadd.f32 %v469, %v512
        %514 = vmatmul.f32.gmra.mxu0 %v428
        %v515 = vpop.f32.mrf.mxu0
        %v516 = vadd.f32 %v469, %v515
        %517 = vmatmul.f32.gmra.mxu0 %v429
        %v518 = vpop.f32.mrf.mxu0
        %v519 = vadd.f32 %v469, %v518
        %520 = vmatmul.f32.gmra.mxu0 %v430
        %v521 = vpop.f32.mrf.mxu0
        %v522 = vadd.f32 %v469, %v521
        %523 = vmatmul.f32.gmra.mxu0 %v431
        %v524 = vpop.f32.mrf.mxu0
        %v525 = vadd.f32 %v469, %v524
        %526 = vmatmul.f32.gmra.mxu0 %v432
        %v527 = vpop.f32.mrf.mxu0
        %v528 = vadd.f32 %v469, %v527
        %529 = vmatmul.f32.gmra.mxu0 %v433
        %v530 = vpop.f32.mrf.mxu0
        %v531 = vadd.f32 %v469, %v530
        %532 = vmatmul.f32.gmra.mxu0 %v434
        %v533 = vpop.f32.mrf.mxu0
        %v534 = vadd.f32 %v469, %v533
        %535 = vmatmul.f32.gmra.mxu0 %v435
        %v536 = vpop.f32.mrf.mxu0
        %v537 = vadd.f32 %v469, %v536
        %538 = vmatmul.f32.gmra.mxu0 %v436
        %v539 = vpop.f32.mrf.mxu0
        %v540 = vadd.f32 %v469, %v539
        %541 = vmatmul.f32.gmra.mxu0 %v437
        %v542 = vpop.f32.mrf.mxu0
        %v543 = vadd.f32 %v469, %v542
        %544 = vmatmul.f32.gmra.mxu0 %v438
        %v545 = vpop.f32.mrf.mxu0
        %v546 = vadd.f32 %v469, %v545
        %547 = vmatmul.f32.gmra.mxu0 %v439
        %v548 = vpop.f32.mrf.mxu0
        %v549 = vadd.f32 %v469, %v548
        %550 = vmatmul.f32.gmra.mxu0 %v440
        %v551 = vpop.f32.mrf.mxu0
        %v552 = vadd.f32 %v469, %v551
        %553 = vmatmul.f32.gmra.mxu0 %v441
        %v554 = vpop.f32.mrf.mxu0
        %v555 = vadd.f32 %v469, %v554
        %556 = vmatmul.f32.gmra.mxu0 %v442
        %v557 = vpop.f32.mrf.mxu0
        %v558 = vadd.f32 %v469, %v557
        %559 = vmatmul.f32.gmra.mxu0 %v443
        %v560 = vpop.f32.mrf.mxu0
        %v561 = vadd.f32 %v469, %v560
        %562 = vmatmul.f32.gmra.mxu0 %v444
        %v563 = vpop.f32.mrf.mxu0
        %v564 = vadd.f32 %v469, %v563
        %565 = vmatmul.f32.gmra.mxu0 %v445
        %v566 = vpop.f32.mrf.mxu0
        %v567 = vadd.f32 %v469, %v566
        %568 = vmatmul.f32.gmra.mxu0 %v446
        %v569 = vpop.f32.mrf.mxu0
        %v570 = vadd.f32 %v469, %v569
        %571 = vmatmul.f32.gmra.mxu0 %v447
        %v572 = vpop.f32.mrf.mxu0
        %v573 = vadd.f32 %v469, %v572
        %574 = vmatmul.f32.gmra.mxu0 %v448
        %v575 = vpop.f32.mrf.mxu0
        %v576 = vadd.f32 %v469, %v575
        %577 = vmatmul.f32.gmra.mxu0 %v449
        %v578 = vpop.f32.mrf.mxu0
        %v579 = vadd.f32 %v469, %v578
        %580 = vmatmul.f32.gmra.mxu0 %v450
        %v581 = vpop.f32.mrf.mxu0
        %v582 = vadd.f32 %v469, %v581
        %583 = vdwg.mxu0
        %v584 = vmax.f32 %v489, 0.0
        %v585 = vmax.f32 %v492, 0.0
        %v586 = vmax.f32 %v495, 0.0
        %v587 = vmax.f32 %v498, 0.0
        %v588 = vmax.f32 %v501, 0.0
        %v589 = vmax.f32 %v504, 0.0
        %v590 = vmax.f32 %v507, 0.0
        %v591 = vmax.f32 %v510, 0.0
        %v592 = vmax.f32 %v513, 0.0
        %v593 = vmax.f32 %v516, 0.0
        %v594 = vmax.f32 %v519, 0.0
        %v595 = vmax.f32 %v522, 0.0
        %v596 = vmax.f32 %v525, 0.0
        %v597 = vmax.f32 %v528, 0.0
        %v598 = vmax.f32 %v531, 0.0
        %v599 = vmax.f32 %v534, 0.0
        %v600 = vmax.f32 %v537, 0.0
        %v601 = vmax.f32 %v540, 0.0
        %v602 = vmax.f32 %v543, 0.0
        %v603 = vmax.f32 %v546, 0.0
        %v604 = vmax.f32 %v549, 0.0
        %v605 = vmax.f32 %v552, 0.0
        %v606 = vmax.f32 %v555, 0.0
        %v607 = vmax.f32 %v558, 0.0
        %v608 = vmax.f32 %v561, 0.0
        %v609 = vmax.f32 %v564, 0.0
        %v610 = vmax.f32 %v567, 0.0
        %v611 = vmax.f32 %v570, 0.0
        %v612 = vmax.f32 %v573, 0.0
        %v613 = vmax.f32 %v576, 0.0
        %v614 = vmax.f32 %v579, 0.0
        %v615 = vmax.f32 %v582, 0.0
        %vm648 = vcmask 1040384
        %v649 = vrot.slane %v584, 7
        %v650 = vrot.slane %v585, 7
        %v651 = vsel %vm648, %v649, %v650
        %v652 = vrot.slane %v586, 7
        %v653 = vrot.slane %v587, 7
        %v654 = vsel %vm648, %v652, %v653
        %v655 = vrot.slane %v588, 7
        %v656 = vrot.slane %v589, 7
        %v657 = vsel %vm648, %v655, %v656
        %v658 = vrot.slane %v590, 7
        %v659 = vrot.slane %v591, 7
        %v660 = vsel %vm648, %v658, %v659
        %v661 = vrot.slane %v592, 7
        %v662 = vrot.slane %v593, 7
        %v663 = vsel %vm648, %v661, %v662
        %v664 = vrot.slane %v594, 7
        %v665 = vrot.slane %v595, 7
        %v666 = vsel %vm648, %v664, %v665
        %v667 = vrot.slane %v596, 7
        %v668 = vrot.slane %v597, 7
        %v669 = vsel %vm648, %v667, %v668
        %v670 = vrot.slane %v598, 7
        %v671 = vrot.slane %v599, 7
        %v672 = vsel %vm648, %v670, %v671
        %v673 = vrot.slane %v600, 7
        %v674 = vrot.slane %v601, 7
        %v675 = vsel %vm648, %v673, %v674
        %v676 = vrot.slane %v602, 7
        %v677 = vrot.slane %v603, 7
        %v678 = vsel %vm648, %v676, %v677
        %v679 = vrot.slane %v604, 7
        %v680 = vrot.slane %v605, 7
        %v681 = vsel %vm648, %v679, %v680
        %v682 = vrot.slane %v606, 7
        %v683 = vrot.slane %v607, 7
        %v684 = vsel %vm648, %v682, %v683
        %v685 = vrot.slane %v608, 7
        %v686 = vrot.slane %v609, 7
        %v687 = vsel %vm648, %v685, %v686
        %v688 = vrot.slane %v610, 7
        %v689 = vrot.slane %v611, 7
        %v690 = vsel %vm648, %v688, %v689
        %v691 = vrot.slane %v612, 7
        %v692 = vrot.slane %v613, 7
        %v693 = vsel %vm648, %v691, %v692
        %v694 = vrot.slane %v614, 7
        %v695 = vrot.slane %v615, 7
        %v696 = vsel %vm648, %v694, %v695
        %v745 = vsel %vm648, 0.0, %v649
        %v746 = vsel %vm648, 0.0, %v652
        %v747 = vsel %vm648, 0.0, %v655
        %v748 = vsel %vm648, 0.0, %v658
        %v749 = vsel %vm648, 0.0, %v661
        %v750 = vsel %vm648, 0.0, %v664
        %v751 = vsel %vm648, 0.0, %v667
        %v752 = vsel %vm648, 0.0, %v670
        %v753 = vsel %vm648, 0.0, %v673
        %v754 = vsel %vm648, 0.0, %v676
        %v755 = vsel %vm648, 0.0, %v679
        %v756 = vsel %vm648, 0.0, %v682
        %v757 = vsel %vm648, 0.0, %v685
        %v758 = vsel %vm648, 0.0, %v688
        %v759 = vsel %vm648, 0.0, %v691
        %v760 = vsel %vm648, 0.0, %v694
        %v761 = vsel %vm648, %v650, 0.0
        %v762 = vsel %vm648, %v653, 0.0
        %v763 = vsel %vm648, %v656, 0.0
        %v764 = vsel %vm648, %v659, 0.0
        %v765 = vsel %vm648, %v662, 0.0
        %v766 = vsel %vm648, %v665, 0.0
        %v767 = vsel %vm648, %v668, 0.0
        %v768 = vsel %vm648, %v671, 0.0
        %v769 = vsel %vm648, %v674, 0.0
        %v770 = vsel %vm648, %v677, 0.0
        %v771 = vsel %vm648, %v680, 0.0
        %v772 = vsel %vm648, %v683, 0.0
        %v773 = vsel %vm648, %v686, 0.0
        %v774 = vsel %vm648, %v689, 0.0
        %v775 = vsel %vm648, %v692, 0.0
        %v776 = vsel %vm648, %v695, 0.0
        %vm808 = vcmask 1046528
        %v809 = vrot.slane 0.0, 1
        %v810 = vsel %vm808, %v809, %v809
        %v811 = vrot.slane %v745, 1
        %v812 = vrot.slane %v651, 1
        %v813 = vsel %vm808, %v811, %v812
        %v814 = vrot.slane %v761, 1
        %v815 = vsel %vm808, %v812, %v814
        %v816 = vrot.slane %v746, 1
        %v817 = vrot.slane %v654, 1
        %v818 = vsel %vm808, %v816, %v817
        %v819 = vrot.slane %v762, 1
        %v820 = vsel %vm808, %v817, %v819
        %v821 = vrot.slane %v747, 1
        %v822 = vrot.slane %v657, 1
        %v823 = vsel %vm808, %v821, %v822
        %v824 = vrot.slane %v763, 1
        %v825 = vsel %vm808, %v822, %v824
        %v826 = vrot.slane %v748, 1
        %v827 = vrot.slane %v660, 1
        %v828 = vsel %vm808, %v826, %v827
        %v829 = vrot.slane %v764, 1
        %v830 = vsel %vm808, %v827, %v829
        %v831 = vrot.slane %v749, 1
        %v832 = vrot.slane %v663, 1
        %v833 = vsel %vm808, %v831, %v832
        %v834 = vrot.slane %v765, 1
        %v835 = vsel %vm808, %v832, %v834
        %v836 = vrot.slane %v750, 1
        %v837 = vrot.slane %v666, 1
        %v838 = vsel %vm808, %v836, %v837
        %v839 = vrot.slane %v766, 1
        %v840 = vsel %vm808, %v837, %v839
        %v841 = vrot.slane %v751, 1
        %v842 = vrot.slane %v669, 1
        %v843 = vsel %vm808, %v841, %v842
        %v844 = vrot.slane %v767, 1
        %v845 = vsel %vm808, %v842, %v844
        %v846 = vrot.slane %v752, 1
        %v847 = vrot.slane %v672, 1
        %v848 = vsel %vm808, %v846, %v847
        %v849 = vrot.slane %v768, 1
        %v850 = vsel %vm808, %v847, %v849
        %v851 = vrot.slane %v753, 1
        %v852 = vrot.slane %v675, 1
        %v853 = vsel %vm808, %v851, %v852
        %v854 = vrot.slane %v769, 1
        %v855 = vsel %vm808, %v852, %v854
        %v856 = vrot.slane %v754, 1
        %v857 = vrot.slane %v678, 1
        %v858 = vsel %vm808, %v856, %v857
        %v859 = vrot.slane %v770, 1
        %v860 = vsel %vm808, %v857, %v859
        %v861 = vrot.slane %v755, 1
        %v862 = vrot.slane %v681, 1
        %v863 = vsel %vm808, %v861, %v862
        %v864 = vrot.slane %v771, 1
        %v865 = vsel %vm808, %v862, %v864
        %v866 = vrot.slane %v756, 1
        %v867 = vrot.slane %v684, 1
        %v868 = vsel %vm808, %v866, %v867
        %v869 = vrot.slane %v772, 1
        %v870 = vsel %vm808, %v867, %v869
        %v871 = vrot.slane %v757, 1
        %v872 = vrot.slane %v687, 1
        %v873 = vsel %vm808, %v871, %v872
        %v874 = vrot.slane %v773, 1
        %v875 = vsel %vm808, %v872, %v874
        %v876 = vrot.slane %v758, 1
        %v877 = vrot.slane %v690, 1
        %v878 = vsel %vm808, %v876, %v877
        %v879 = vrot.slane %v774, 1
        %v880 = vsel %vm808, %v877, %v879
        %v881 = vrot.slane %v759, 1
        %v882 = vrot.slane %v693, 1
        %v883 = vsel %vm808, %v881, %v882
        %v884 = vrot.slane %v775, 1
        %v885 = vsel %vm808, %v882, %v884
        %vm917 = vcmask 1045504
        %v918 = vrot.slane 0.0, 2
        %v919 = vsel %vm917, %v918, %v918
        %v920 = vrot.slane %v745, 2
        %v921 = vrot.slane %v651, 2
        %v922 = vsel %vm917, %v920, %v921
        %v923 = vrot.slane %v761, 2
        %v924 = vsel %vm917, %v921, %v923
        %v925 = vrot.slane %v746, 2
        %v926 = vrot.slane %v654, 2
        %v927 = vsel %vm917, %v925, %v926
        %v928 = vrot.slane %v762, 2
        %v929 = vsel %vm917, %v926, %v928
        %v930 = vrot.slane %v747, 2
        %v931 = vrot.slane %v657, 2
        %v932 = vsel %vm917, %v930, %v931
        %v933 = vrot.slane %v763, 2
        %v934 = vsel %vm917, %v931, %v933
        %v935 = vrot.slane %v748, 2
        %v936 = vrot.slane %v660, 2
        %v937 = vsel %vm917, %v935, %v936
        %v938 = vrot.slane %v764, 2
        %v939 = vsel %vm917, %v936, %v938
        %v940 = vrot.slane %v749, 2
        %v941 = vrot.slane %v663, 2
        %v942 = vsel %vm917, %v940, %v941
        %v943 = vrot.slane %v765, 2
        %v944 = vsel %vm917, %v941, %v943
        %v945 = vrot.slane %v750, 2
        %v946 = vrot.slane %v666, 2
        %v947 = vsel %vm917, %v945, %v946
        %v948 = vrot.slane %v766, 2
        %v949 = vsel %vm917, %v946, %v948
        %v950 = vrot.slane %v751, 2
        %v951 = vrot.slane %v669, 2
        %v952 = vsel %vm917, %v950, %v951
        %v953 = vrot.slane %v767, 2
        %v954 = vsel %vm917, %v951, %v953
        %v955 = vrot.slane %v752, 2
        %v956 = vrot.slane %v672, 2
        %v957 = vsel %vm917, %v955, %v956
        %v958 = vrot.slane %v768, 2
        %v959 = vsel %vm917, %v956, %v958
        %v960 = vrot.slane %v753, 2
        %v961 = vrot.slane %v675, 2
        %v962 = vsel %vm917, %v960, %v961
        %v963 = vrot.slane %v769, 2
        %v964 = vsel %vm917, %v961, %v963
        %v965 = vrot.slane %v754, 2
        %v966 = vrot.slane %v678, 2
        %v967 = vsel %vm917, %v965, %v966
        %v968 = vrot.slane %v770, 2
        %v969 = vsel %vm917, %v966, %v968
        %v970 = vrot.slane %v755, 2
        %v971 = vrot.slane %v681, 2
        %v972 = vsel %vm917, %v970, %v971
        %v973 = vrot.slane %v771, 2
        %v974 = vsel %vm917, %v971, %v973
        %v975 = vrot.slane %v756, 2
        %v976 = vrot.slane %v684, 2
        %v977 = vsel %vm917, %v975, %v976
        %v978 = vrot.slane %v772, 2
        %v979 = vsel %vm917, %v976, %v978
        %v980 = vrot.slane %v757, 2
        %v981 = vrot.slane %v687, 2
        %v982 = vsel %vm917, %v980, %v981
        %v983 = vrot.slane %v773, 2
        %v984 = vsel %vm917, %v981, %v983
        %v985 = vrot.slane %v758, 2
        %v986 = vrot.slane %v690, 2
        %v987 = vsel %vm917, %v985, %v986
        %v988 = vrot.slane %v774, 2
        %v989 = vsel %vm917, %v986, %v988
        %v990 = vrot.slane %v759, 2
        %v991 = vrot.slane %v693, 2
        %v992 = vsel %vm917, %v990, %v991
        %v993 = vrot.slane %v775, 2
        %v994 = vsel %vm917, %v991, %v993
        %v1026 = vld [vmem:[#allocation7] sm:$0xff]
        %v1027 = vld [vmem:[#allocation7 + $0x8] sm:$0xff]
        %v1028 = vld [vmem:[#allocation7 + $0x10] sm:$0xff]
        %v1029 = vld [vmem:[#allocation7 + $0x18] sm:$0xff]
        %v1030 = vld [vmem:[#allocation7 + $0x20] sm:$0xff]
        %v1031 = vld [vmem:[#allocation7 + $0x28] sm:$0xff]
        %v1032 = vld [vmem:[#allocation7 + $0x30] sm:$0xff]
        %v1033 = vld [vmem:[#allocation7 + $0x38] sm:$0xff]
        %v1034 = vld [vmem:[#allocation7 + $0x40] sm:$0xff]
        %v1035 = vld [vmem:[#allocation7 + $0x48] sm:$0xff]
        %v1036 = vld [vmem:[#allocation7 + $0x50] sm:$0xff]
        %v1037 = vld [vmem:[#allocation7 + $0x58] sm:$0xff]
        %v1038 = vld [vmem:[#allocation7 + $0x60] sm:$0xff]
        %v1039 = vld [vmem:[#allocation7 + $0x68] sm:$0xff]
        %v1040 = vld [vmem:[#allocation7 + $0x70] sm:$0xff]
        %v1041 = vld [vmem:[#allocation7 + $0x78] sm:$0xff]
        %v1042 = vld [vmem:[#allocation7 + $0x80] sm:$0xff]
        %v1043 = vld [vmem:[#allocation7 + $0x88] sm:$0xff]
        %v1044 = vld [vmem:[#allocation7 + $0x90] sm:$0xff]
        %v1045 = vld [vmem:[#allocation7 + $0x98] sm:$0xff]
        %v1046 = vld [vmem:[#allocation7 + $0xa0] sm:$0xff]
        %v1047 = vld [vmem:[#allocation7 + $0xa8] sm:$0xff]
        %v1048 = vld [vmem:[#allocation7 + $0xb0] sm:$0xff]
        %v1049 = vld [vmem:[#allocation7 + $0xb8] sm:$0xff]
        %v1050 = vld [vmem:[#allocation7 + $0xc0] sm:$0xff]
        %v1051 = vld [vmem:[#allocation7 + $0xc8] sm:$0xff]
        %v1052 = vld [vmem:[#allocation7 + $0xd0] sm:$0xff]
        %v1053 = vld [vmem:[#allocation7 + $0xd8] sm:$0xff]
        %v1054 = vld [vmem:[#allocation7 + $0xe0] sm:$0xff]
        %v1055 = vld [vmem:[#allocation7 + $0xe8] sm:$0xff]
        %v1056 = vld [vmem:[#allocation7 + $0xf0] sm:$0xff]
        %v1057 = vld [vmem:[#allocation7 + $0xf8] sm:$0xff]
        %v1058 = vld [vmem:[#allocation7 + $0x100] sm:$0xff]
        %v1059 = vld [vmem:[#allocation7 + $0x108] sm:$0xff]
        %v1060 = vld [vmem:[#allocation7 + $0x110] sm:$0xff]
        %v1061 = vld [vmem:[#allocation7 + $0x118] sm:$0xff]
        %v1062 = vld [vmem:[#allocation7 + $0x120] sm:$0xff]
        %v1063 = vld [vmem:[#allocation7 + $0x128] sm:$0xff]
        %v1064 = vld [vmem:[#allocation7 + $0x130] sm:$0xff]
        %v1065 = vld [vmem:[#allocation7 + $0x138] sm:$0xff]
        %v1066 = vld [vmem:[#allocation7 + $0x140] sm:$0xff]
        %v1067 = vld [vmem:[#allocation7 + $0x148] sm:$0xff]
        %v1068 = vld [vmem:[#allocation7 + $0x150] sm:$0xff]
        %v1069 = vld [vmem:[#allocation7 + $0x158] sm:$0xff]
        %v1070 = vld [vmem:[#allocation7 + $0x160] sm:$0xff]
        %v1071 = vld [vmem:[#allocation7 + $0x168] sm:$0xff]
        %v1072 = vld [vmem:[#allocation7 + $0x170] sm:$0xff]
        %v1073 = vld [vmem:[#allocation7 + $0x178] sm:$0xff]
        %v1076 = vrot.slane %v760, 1
        %v1077 = vrot.slane %v696, 1
        %v1078 = vsel %vm808, %v1076, %v1077
        %v1079 = vrot.slane %v776, 1
        %v1080 = vsel %vm808, %v1077, %v1079
        %v1083 = vrot.slane %v760, 2
        %v1084 = vrot.slane %v696, 2
        %v1085 = vsel %vm917, %v1083, %v1084
        %v1086 = vrot.slane %v776, 2
        %v1087 = vsel %vm917, %v1084, %v1086
        %s1090 = scalar_lea.vmem [#allocation7], 384
        %v1091 = vld [vmem:[%s1090] sm:$0xff]
        %v1092 = vld [vmem:[%s1090 + $0x8] sm:$0xff]
        %v1093 = vld [vmem:[%s1090 + $0x10] sm:$0xff]
        %v1094 = vld [vmem:[%s1090 + $0x18] sm:$0xff]
        %v1095 = vld [vmem:[%s1090 + $0x20] sm:$0xff]
        %v1096 = vld [vmem:[%s1090 + $0x28] sm:$0xff]
        %v1097 = vld [vmem:[%s1090 + $0x30] sm:$0xff]
        %v1098 = vld [vmem:[%s1090 + $0x38] sm:$0xff]
        %v1099 = vld [vmem:[%s1090 + $0x40] sm:$0xff]
        %v1100 = vld [vmem:[%s1090 + $0x48] sm:$0xff]
        %v1101 = vld [vmem:[%s1090 + $0x50] sm:$0xff]
        %v1102 = vld [vmem:[%s1090 + $0x58] sm:$0xff]
        %v1103 = vld [vmem:[%s1090 + $0x60] sm:$0xff]
        %v1104 = vld [vmem:[%s1090 + $0x68] sm:$0xff]
        %v1105 = vld [vmem:[%s1090 + $0x70] sm:$0xff]
        %v1106 = vld [vmem:[%s1090 + $0x78] sm:$0xff]
        %v1107 = vld [vmem:[%s1090 + $0x80] sm:$0xff]
        %v1108 = vld [vmem:[%s1090 + $0x88] sm:$0xff]
        %v1109 = vld [vmem:[%s1090 + $0x90] sm:$0xff]
        %v1110 = vld [vmem:[%s1090 + $0x98] sm:$0xff]
        %v1111 = vld [vmem:[%s1090 + $0xa0] sm:$0xff]
        %v1112 = vld [vmem:[%s1090 + $0xa8] sm:$0xff]
        %v1113 = vld [vmem:[%s1090 + $0xb0] sm:$0xff]
        %v1114 = vld [vmem:[%s1090 + $0xb8] sm:$0xff]
        %v1115 = vld [vmem:[%s1090 + $0xc0] sm:$0xff]
        %v1116 = vld [vmem:[%s1090 + $0xc8] sm:$0xff]
        %v1117 = vld [vmem:[%s1090 + $0xd0] sm:$0xff]
        %v1118 = vld [vmem:[%s1090 + $0xd8] sm:$0xff]
        %v1119 = vld [vmem:[%s1090 + $0xe0] sm:$0xff]
        %v1120 = vld [vmem:[%s1090 + $0xe8] sm:$0xff]
        %v1121 = vld [vmem:[%s1090 + $0xf0] sm:$0xff]
        %v1122 = vld [vmem:[%s1090 + $0xf8] sm:$0xff]
        %v1123 = vld [vmem:[%s1090 + $0x100] sm:$0xff]
        %v1124 = vld [vmem:[%s1090 + $0x108] sm:$0xff]
        %v1125 = vld [vmem:[%s1090 + $0x110] sm:$0xff]
        %v1126 = vld [vmem:[%s1090 + $0x118] sm:$0xff]
        %v1127 = vld [vmem:[%s1090 + $0x120] sm:$0xff]
        %v1128 = vld [vmem:[%s1090 + $0x128] sm:$0xff]
        %v1129 = vld [vmem:[%s1090 + $0x130] sm:$0xff]
        %v1130 = vld [vmem:[%s1090 + $0x138] sm:$0xff]
        %v1131 = vld [vmem:[%s1090 + $0x140] sm:$0xff]
        %v1132 = vld [vmem:[%s1090 + $0x148] sm:$0xff]
        %v1133 = vld [vmem:[%s1090 + $0x150] sm:$0xff]
        %v1134 = vld [vmem:[%s1090 + $0x158] sm:$0xff]
        %v1135 = vld [vmem:[%s1090 + $0x160] sm:$0xff]
        %v1136 = vld [vmem:[%s1090 + $0x168] sm:$0xff]
        %v1137 = vld [vmem:[%s1090 + $0x170] sm:$0xff]
        %v1138 = vld [vmem:[%s1090 + $0x178] sm:$0xff]
        %1139 = vmatpush.msra.mxu0 %v1106
        %1140 = vmatpush.msra.mxu0 %v1105
        %1141 = vmatpush.msra.mxu0 %v1104
        %1142 = vmatpush.msra.mxu0 %v1103
        %1143 = vmatpush.msra.mxu0 %v1102
        %1144 = vmatpush.msra.mxu0 %v1101
        %1145 = vmatpush.msra.mxu0 %v1100
        %1146 = vmatpush.msra.mxu0 %v1099
        %1147 = vmatpush.msra.mxu0 %v1098
        %1148 = vmatpush.msra.mxu0 %v1097
        %1149 = vmatpush.msra.mxu0 %v1096
        %1150 = vmatpush.msra.mxu0 %v1095
        %1151 = vmatpush.msra.mxu0 %v1094
        %1152 = vmatpush.msra.mxu0 %v1093
        %1153 = vmatpush.msra.mxu0 %v1092
        %1154 = vmatpush.msra.mxu0 %v1091
        %1155 = vmatmul.f32.gmra.mxu0 %v745
        %v1156 = vpop.f32.mrf.mxu0
        %v1157 = vadd.f32 0.0, %v1156
        %1158 = vmatmul.f32.gmra.mxu0 %v651
        %v1159 = vpop.f32.mrf.mxu0
        %v1160 = vadd.f32 0.0, %v1159
        %1161 = vmatmul.f32.gmra.mxu0 %v746
        %v1162 = vpop.f32.mrf.mxu0
        %v1163 = vadd.f32 0.0, %v1162
        %1164 = vmatmul.f32.gmra.mxu0 %v654
        %v1165 = vpop.f32.mrf.mxu0
        %v1166 = vadd.f32 0.0, %v1165
        %1167 = vmatmul.f32.gmra.mxu0 %v747
        %v1168 = vpop.f32.mrf.mxu0
        %v1169 = vadd.f32 0.0, %v1168
        %1170 = vmatmul.f32.gmra.mxu0 %v657
        %v1171 = vpop.f32.mrf.mxu0
        %v1172 = vadd.f32 0.0, %v1171
        %1173 = vmatmul.f32.gmra.mxu0 %v748
        %v1174 = vpop.f32.mrf.mxu0
        %v1175 = vadd.f32 0.0, %v1174
        %1176 = vmatmul.f32.gmra.mxu0 %v660
        %v1177 = vpop.f32.mrf.mxu0
        %v1178 = vadd.f32 0.0, %v1177
        %1179 = vmatmul.f32.gmra.mxu0 %v749
        %v1180 = vpop.f32.mrf.mxu0
        %v1181 = vadd.f32 0.0, %v1180
        %1182 = vmatmul.f32.gmra.mxu0 %v663
        %v1183 = vpop.f32.mrf.mxu0
        %v1184 = vadd.f32 0.0, %v1183
        %1185 = vmatmul.f32.gmra.mxu0 %v750
        %v1186 = vpop.f32.mrf.mxu0
        %v1187 = vadd.f32 0.0, %v1186
        %1188 = vmatmul.f32.gmra.mxu0 %v666
        %v1189 = vpop.f32.mrf.mxu0
        %v1190 = vadd.f32 0.0, %v1189
        %1191 = vmatmul.f32.gmra.mxu0 %v751
        %v1192 = vpop.f32.mrf.mxu0
        %v1193 = vadd.f32 0.0, %v1192
        %1194 = vmatmul.f32.gmra.mxu0 %v669
        %v1195 = vpop.f32.mrf.mxu0
        %v1196 = vadd.f32 0.0, %v1195
        %1197 = vmatmul.f32.gmra.mxu0 %v752
        %v1198 = vpop.f32.mrf.mxu0
        %v1199 = vadd.f32 0.0, %v1198
        %1200 = vmatmul.f32.gmra.mxu0 %v672
        %v1201 = vpop.f32.mrf.mxu0
        %v1202 = vadd.f32 0.0, %v1201
        %1203 = vmatmul.f32.gmra.mxu0 %v753
        %v1204 = vpop.f32.mrf.mxu0
        %v1205 = vadd.f32 0.0, %v1204
        %1206 = vmatmul.f32.gmra.mxu0 %v675
        %v1207 = vpop.f32.mrf.mxu0
        %v1208 = vadd.f32 0.0, %v1207
        %1209 = vmatmul.f32.gmra.mxu0 %v754
        %v1210 = vpop.f32.mrf.mxu0
        %v1211 = vadd.f32 0.0, %v1210
        %1212 = vmatmul.f32.gmra.mxu0 %v678
        %v1213 = vpop.f32.mrf.mxu0
        %v1214 = vadd.f32 0.0, %v1213
        %1215 = vmatmul.f32.gmra.mxu0 %v755
        %v1216 = vpop.f32.mrf.mxu0
        %v1217 = vadd.f32 0.0, %v1216
        %1218 = vmatmul.f32.gmra.mxu0 %v681
        %v1219 = vpop.f32.mrf.mxu0
        %v1220 = vadd.f32 0.0, %v1219
        %1221 = vmatmul.f32.gmra.mxu0 %v756
        %v1222 = vpop.f32.mrf.mxu0
        %v1223 = vadd.f32 0.0, %v1222
        %1224 = vmatmul.f32.gmra.mxu0 %v684
        %v1225 = vpop.f32.mrf.mxu0
        %v1226 = vadd.f32 0.0, %v1225
        %1227 = vmatmul.f32.gmra.mxu0 %v757
        %v1228 = vpop.f32.mrf.mxu0
        %v1229 = vadd.f32 0.0, %v1228
        %1230 = vmatmul.f32.gmra.mxu0 %v687
        %v1231 = vpop.f32.mrf.mxu0
        %v1232 = vadd.f32 0.0, %v1231
        %1233 = vmatmul.f32.gmra.mxu0 %v758
        %v1234 = vpop.f32.mrf.mxu0
        %v1235 = vadd.f32 0.0, %v1234
        %1236 = vmatmul.f32.gmra.mxu0 %v690
        %v1237 = vpop.f32.mrf.mxu0
        %v1238 = vadd.f32 0.0, %v1237
        %1239 = vmatmul.f32.gmra.mxu0 %v759
        %v1240 = vpop.f32.mrf.mxu0
        %v1241 = vadd.f32 0.0, %v1240
        %1242 = vmatmul.f32.gmra.mxu0 %v693
        %v1243 = vpop.f32.mrf.mxu0
        %v1244 = vadd.f32 0.0, %v1243
        %1245 = vmatmul.f32.gmra.mxu0 %v760
        %v1246 = vpop.f32.mrf.mxu0
        %v1247 = vadd.f32 0.0, %v1246
        %1248 = vmatmul.f32.gmra.mxu0 %v696
        %v1249 = vpop.f32.mrf.mxu0
        %v1250 = vadd.f32 0.0, %v1249
        %1251 = vdwg.mxu0
        %1252 = vmatpush.msra.mxu0 %v1122
        %1253 = vmatpush.msra.mxu0 %v1121
        %1254 = vmatpush.msra.mxu0 %v1120
        %1255 = vmatpush.msra.mxu0 %v1119
        %1256 = vmatpush.msra.mxu0 %v1118
        %1257 = vmatpush.msra.mxu0 %v1117
        %1258 = vmatpush.msra.mxu0 %v1116
        %1259 = vmatpush.msra.mxu0 %v1115
        %1260 = vmatpush.msra.mxu0 %v1114
        %1261 = vmatpush.msra.mxu0 %v1113
        %1262 = vmatpush.msra.mxu0 %v1112
        %1263 = vmatpush.msra.mxu0 %v1111
        %1264 = vmatpush.msra.mxu0 %v1110
        %1265 = vmatpush.msra.mxu0 %v1109
        %1266 = vmatpush.msra.mxu0 %v1108
        %1267 = vmatpush.msra.mxu0 %v1107
        %1268 = vmatmul.f32.gmra.mxu0 %v813
        %v1269 = vpop.f32.mrf.mxu0
        %v1270 = vadd.f32 %v1157, %v1269
        %1271 = vmatmul.f32.gmra.mxu0 %v815
        %v1272 = vpop.f32.mrf.mxu0
        %v1273 = vadd.f32 %v1160, %v1272
        %1274 = vmatmul.f32.gmra.mxu0 %v818
        %v1275 = vpop.f32.mrf.mxu0
        %v1276 = vadd.f32 %v1163, %v1275
        %1277 = vmatmul.f32.gmra.mxu0 %v820
        %v1278 = vpop.f32.mrf.mxu0
        %v1279 = vadd.f32 %v1166, %v1278
        %1280 = vmatmul.f32.gmra.mxu0 %v823
        %v1281 = vpop.f32.mrf.mxu0
        %v1282 = vadd.f32 %v1169, %v1281
        %1283 = vmatmul.f32.gmra.mxu0 %v825
        %v1284 = vpop.f32.mrf.mxu0
        %v1285 = vadd.f32 %v1172, %v1284
        %1286 = vmatmul.f32.gmra.mxu0 %v828
        %v1287 = vpop.f32.mrf.mxu0
        %v1288 = vadd.f32 %v1175, %v1287
        %1289 = vmatmul.f32.gmra.mxu0 %v830
        %v1290 = vpop.f32.mrf.mxu0
        %v1291 = vadd.f32 %v1178, %v1290
        %1292 = vmatmul.f32.gmra.mxu0 %v833
        %v1293 = vpop.f32.mrf.mxu0
        %v1294 = vadd.f32 %v1181, %v1293
        %1295 = vmatmul.f32.gmra.mxu0 %v835
        %v1296 = vpop.f32.mrf.mxu0
        %v1297 = vadd.f32 %v1184, %v1296
        %1298 = vmatmul.f32.gmra.mxu0 %v838
        %v1299 = vpop.f32.mrf.mxu0
        %v1300 = vadd.f32 %v1187, %v1299
        %1301 = vmatmul.f32.gmra.mxu0 %v840
        %v1302 = vpop.f32.mrf.mxu0
        %v1303 = vadd.f32 %v1190, %v1302
        %1304 = vmatmul.f32.gmra.mxu0 %v843
        %v1305 = vpop.f32.mrf.mxu0
        %v1306 = vadd.f32 %v1193, %v1305
        %1307 = vmatmul.f32.gmra.mxu0 %v845
        %v1308 = vpop.f32.mrf.mxu0
        %v1309 = vadd.f32 %v1196, %v1308
        %1310 = vmatmul.f32.gmra.mxu0 %v848
        %v1311 = vpop.f32.mrf.mxu0
        %v1312 = vadd.f32 %v1199, %v1311
        %1313 = vmatmul.f32.gmra.mxu0 %v850
        %v1314 = vpop.f32.mrf.mxu0
        %v1315 = vadd.f32 %v1202, %v1314
        %1316 = vmatmul.f32.gmra.mxu0 %v853
        %v1317 = vpop.f32.mrf.mxu0
        %v1318 = vadd.f32 %v1205, %v1317
        %1319 = vmatmul.f32.gmra.mxu0 %v855
        %v1320 = vpop.f32.mrf.mxu0
        %v1321 = vadd.f32 %v1208, %v1320
        %1322 = vmatmul.f32.gmra.mxu0 %v858
        %v1323 = vpop.f32.mrf.mxu0
        %v1324 = vadd.f32 %v1211, %v1323
        %1325 = vmatmul.f32.gmra.mxu0 %v860
        %v1326 = vpop.f32.mrf.mxu0
        %v1327 = vadd.f32 %v1214, %v1326
        %1328 = vmatmul.f32.gmra.mxu0 %v863
        %v1329 = vpop.f32.mrf.mxu0
        %v1330 = vadd.f32 %v1217, %v1329
        %1331 = vmatmul.f32.gmra.mxu0 %v865
        %v1332 = vpop.f32.mrf.mxu0
        %v1333 = vadd.f32 %v1220, %v1332
        %1334 = vmatmul.f32.gmra.mxu0 %v868
        %v1335 = vpop.f32.mrf.mxu0
        %v1336 = vadd.f32 %v1223, %v1335
        %1337 = vmatmul.f32.gmra.mxu0 %v870
        %v1338 = vpop.f32.mrf.mxu0
        %v1339 = vadd.f32 %v1226, %v1338
        %1340 = vmatmul.f32.gmra.mxu0 %v873
        %v1341 = vpop.f32.mrf.mxu0
        %v1342 = vadd.f32 %v1229, %v1341
        %1343 = vmatmul.f32.gmra.mxu0 %v875
        %v1344 = vpop.f32.mrf.mxu0
        %v1345 = vadd.f32 %v1232, %v1344
        %1346 = vmatmul.f32.gmra.mxu0 %v878
        %v1347 = vpop.f32.mrf.mxu0
        %v1348 = vadd.f32 %v1235, %v1347
        %1349 = vmatmul.f32.gmra.mxu0 %v880
        %v1350 = vpop.f32.mrf.mxu0
        %v1351 = vadd.f32 %v1238, %v1350
        %1352 = vmatmul.f32.gmra.mxu0 %v883
        %v1353 = vpop.f32.mrf.mxu0
        %v1354 = vadd.f32 %v1241, %v1353
        %1355 = vmatmul.f32.gmra.mxu0 %v885
        %v1356 = vpop.f32.mrf.mxu0
        %v1357 = vadd.f32 %v1244, %v1356
        %1358 = vmatmul.f32.gmra.mxu0 %v1078
        %v1359 = vpop.f32.mrf.mxu0
        %v1360 = vadd.f32 %v1247, %v1359
        %1361 = vmatmul.f32.gmra.mxu0 %v1080
        %v1362 = vpop.f32.mrf.mxu0
        %v1363 = vadd.f32 %v1250, %v1362
        %1364 = vdwg.mxu0
        %1365 = vmatpush.msra.mxu0 %v1138
        %1366 = vmatpush.msra.mxu0 %v1137
        %1367 = vmatpush.msra.mxu0 %v1136
        %1368 = vmatpush.msra.mxu0 %v1135
        %1369 = vmatpush.msra.mxu0 %v1134
        %1370 = vmatpush.msra.mxu0 %v1133
        %1371 = vmatpush.msra.mxu0 %v1132
        %1372 = vmatpush.msra.mxu0 %v1131
        %1373 = vmatpush.msra.mxu0 %v1130
        %1374 = vmatpush.msra.mxu0 %v1129
        %1375 = vmatpush.msra.mxu0 %v1128
        %1376 = vmatpush.msra.mxu0 %v1127
        %1377 = vmatpush.msra.mxu0 %v1126
        %1378 = vmatpush.msra.mxu0 %v1125
        %1379 = vmatpush.msra.mxu0 %v1124
        %1380 = vmatpush.msra.mxu0 %v1123
        %1381 = vmatmul.f32.gmra.mxu0 %v922
        %v1382 = vpop.f32.mrf.mxu0
        %v1383 = vadd.f32 %v1270, %v1382
        %1384 = vmatmul.f32.gmra.mxu0 %v924
        %v1385 = vpop.f32.mrf.mxu0
        %v1386 = vadd.f32 %v1273, %v1385
        %1387 = vmatmul.f32.gmra.mxu0 %v927
        %v1388 = vpop.f32.mrf.mxu0
        %v1389 = vadd.f32 %v1276, %v1388
        %1390 = vmatmul.f32.gmra.mxu0 %v929
        %v1391 = vpop.f32.mrf.mxu0
        %v1392 = vadd.f32 %v1279, %v1391
        %1393 = vmatmul.f32.gmra.mxu0 %v932
        %v1394 = vpop.f32.mrf.mxu0
        %v1395 = vadd.f32 %v1282, %v1394
        %1396 = vmatmul.f32.gmra.mxu0 %v934
        %v1397 = vpop.f32.mrf.mxu0
        %v1398 = vadd.f32 %v1285, %v1397
        %1399 = vmatmul.f32.gmra.mxu0 %v937
        %v1400 = vpop.f32.mrf.mxu0
        %v1401 = vadd.f32 %v1288, %v1400
        %1402 = vmatmul.f32.gmra.mxu0 %v939
        %v1403 = vpop.f32.mrf.mxu0
        %v1404 = vadd.f32 %v1291, %v1403
        %1405 = vmatmul.f32.gmra.mxu0 %v942
        %v1406 = vpop.f32.mrf.mxu0
        %v1407 = vadd.f32 %v1294, %v1406
        %1408 = vmatmul.f32.gmra.mxu0 %v944
        %v1409 = vpop.f32.mrf.mxu0
        %v1410 = vadd.f32 %v1297, %v1409
        %1411 = vmatmul.f32.gmra.mxu0 %v947
        %v1412 = vpop.f32.mrf.mxu0
        %v1413 = vadd.f32 %v1300, %v1412
        %1414 = vmatmul.f32.gmra.mxu0 %v949
        %v1415 = vpop.f32.mrf.mxu0
        %v1416 = vadd.f32 %v1303, %v1415
        %1417 = vmatmul.f32.gmra.mxu0 %v952
        %v1418 = vpop.f32.mrf.mxu0
        %v1419 = vadd.f32 %v1306, %v1418
        %1420 = vmatmul.f32.gmra.mxu0 %v954
        %v1421 = vpop.f32.mrf.mxu0
        %v1422 = vadd.f32 %v1309, %v1421
        %1423 = vmatmul.f32.gmra.mxu0 %v957
        %v1424 = vpop.f32.mrf.mxu0
        %v1425 = vadd.f32 %v1312, %v1424
        %1426 = vmatmul.f32.gmra.mxu0 %v959
        %v1427 = vpop.f32.mrf.mxu0
        %v1428 = vadd.f32 %v1315, %v1427
        %1429 = vmatmul.f32.gmra.mxu0 %v962
        %v1430 = vpop.f32.mrf.mxu0
        %v1431 = vadd.f32 %v1318, %v1430
        %1432 = vmatmul.f32.gmra.mxu0 %v964
        %v1433 = vpop.f32.mrf.mxu0
        %v1434 = vadd.f32 %v1321, %v1433
        %1435 = vmatmul.f32.gmra.mxu0 %v967
        %v1436 = vpop.f32.mrf.mxu0
        %v1437 = vadd.f32 %v1324, %v1436
        %1438 = vmatmul.f32.gmra.mxu0 %v969
        %v1439 = vpop.f32.mrf.mxu0
        %v1440 = vadd.f32 %v1327, %v1439
        %1441 = vmatmul.f32.gmra.mxu0 %v972
        %v1442 = vpop.f32.mrf.mxu0
        %v1443 = vadd.f32 %v1330, %v1442
        %1444 = vmatmul.f32.gmra.mxu0 %v974
        %v1445 = vpop.f32.mrf.mxu0
        %v1446 = vadd.f32 %v1333, %v1445
        %1447 = vmatmul.f32.gmra.mxu0 %v977
        %v1448 = vpop.f32.mrf.mxu0
        %v1449 = vadd.f32 %v1336, %v1448
        %1450 = vmatmul.f32.gmra.mxu0 %v979
        %v1451 = vpop.f32.mrf.mxu0
        %v1452 = vadd.f32 %v1339, %v1451
        %1453 = vmatmul.f32.gmra.mxu0 %v982
        %v1454 = vpop.f32.mrf.mxu0
        %v1455 = vadd.f32 %v1342, %v1454
        %1456 = vmatmul.f32.gmra.mxu0 %v984
        %v1457 = vpop.f32.mrf.mxu0
        %v1458 = vadd.f32 %v1345, %v1457
        %1459 = vmatmul.f32.gmra.mxu0 %v987
        %v1460 = vpop.f32.mrf.mxu0
        %v1461 = vadd.f32 %v1348, %v1460
        %1462 = vmatmul.f32.gmra.mxu0 %v989
        %v1463 = vpop.f32.mrf.mxu0
        %v1464 = vadd.f32 %v1351, %v1463
        %1465 = vmatmul.f32.gmra.mxu0 %v992
        %v1466 = vpop.f32.mrf.mxu0
        %v1467 = vadd.f32 %v1354, %v1466
        %1468 = vmatmul.f32.gmra.mxu0 %v994
        %v1469 = vpop.f32.mrf.mxu0
        %v1470 = vadd.f32 %v1357, %v1469
        %1471 = vmatmul.f32.gmra.mxu0 %v1085
        %v1472 = vpop.f32.mrf.mxu0
        %v1473 = vadd.f32 %v1360, %v1472
        %1474 = vmatmul.f32.gmra.mxu0 %v1087
        %v1475 = vpop.f32.mrf.mxu0
        %v1476 = vadd.f32 %v1363, %v1475
        %1477 = vdwg.mxu0
        %1478 = vmatpush.msra.mxu0 %v1041
        %1479 = vmatpush.msra.mxu0 %v1040
        %1480 = vmatpush.msra.mxu0 %v1039
        %1481 = vmatpush.msra.mxu0 %v1038
        %1482 = vmatpush.msra.mxu0 %v1037
        %1483 = vmatpush.msra.mxu0 %v1036
        %1484 = vmatpush.msra.mxu0 %v1035
        %1485 = vmatpush.msra.mxu0 %v1034
        %1486 = vmatpush.msra.mxu0 %v1033
        %1487 = vmatpush.msra.mxu0 %v1032
        %1488 = vmatpush.msra.mxu0 %v1031
        %1489 = vmatpush.msra.mxu0 %v1030
        %1490 = vmatpush.msra.mxu0 %v1029
        %1491 = vmatpush.msra.mxu0 %v1028
        %1492 = vmatpush.msra.mxu0 %v1027
        %1493 = vmatpush.msra.mxu0 %v1026
        %1494 = vmatmul.f32.gmra.mxu0 0.0
        %v1495 = vpop.f32.mrf.mxu0
        %v1496 = vadd.f32 %v1383, %v1495
        %1497 = vmatmul.f32.gmra.mxu0 0.0
        %v1498 = vpop.f32.mrf.mxu0
        %v1499 = vadd.f32 %v1386, %v1498
        %1500 = vmatmul.f32.gmra.mxu0 %v745
        %v1501 = vpop.f32.mrf.mxu0
        %v1502 = vadd.f32 %v1389, %v1501
        %1503 = vmatmul.f32.gmra.mxu0 %v651
        %v1504 = vpop.f32.mrf.mxu0
        %v1505 = vadd.f32 %v1392, %v1504
        %1506 = vmatmul.f32.gmra.mxu0 %v746
        %v1507 = vpop.f32.mrf.mxu0
        %v1508 = vadd.f32 %v1395, %v1507
        %1509 = vmatmul.f32.gmra.mxu0 %v654
        %v1510 = vpop.f32.mrf.mxu0
        %v1511 = vadd.f32 %v1398, %v1510
        %1512 = vmatmul.f32.gmra.mxu0 %v747
        %v1513 = vpop.f32.mrf.mxu0
        %v1514 = vadd.f32 %v1401, %v1513
        %1515 = vmatmul.f32.gmra.mxu0 %v657
        %v1516 = vpop.f32.mrf.mxu0
        %v1517 = vadd.f32 %v1404, %v1516
        %1518 = vmatmul.f32.gmra.mxu0 %v748
        %v1519 = vpop.f32.mrf.mxu0
        %v1520 = vadd.f32 %v1407, %v1519
        %1521 = vmatmul.f32.gmra.mxu0 %v660
        %v1522 = vpop.f32.mrf.mxu0
        %v1523 = vadd.f32 %v1410, %v1522
        %1524 = vmatmul.f32.gmra.mxu0 %v749
        %v1525 = vpop.f32.mrf.mxu0
        %v1526 = vadd.f32 %v1413, %v1525
        %1527 = vmatmul.f32.gmra.mxu0 %v663
        %v1528 = vpop.f32.mrf.mxu0
        %v1529 = vadd.f32 %v1416, %v1528
        %1530 = vmatmul.f32.gmra.mxu0 %v750
        %v1531 = vpop.f32.mrf.mxu0
        %v1532 = vadd.f32 %v1419, %v1531
        %1533 = vmatmul.f32.gmra.mxu0 %v666
        %v1534 = vpop.f32.mrf.mxu0
        %v1535 = vadd.f32 %v1422, %v1534
        %1536 = vmatmul.f32.gmra.mxu0 %v751
        %v1537 = vpop.f32.mrf.mxu0
        %v1538 = vadd.f32 %v1425, %v1537
        %1539 = vmatmul.f32.gmra.mxu0 %v669
        %v1540 = vpop.f32.mrf.mxu0
        %v1541 = vadd.f32 %v1428, %v1540
        %1542 = vmatmul.f32.gmra.mxu0 %v752
        %v1543 = vpop.f32.mrf.mxu0
        %v1544 = vadd.f32 %v1431, %v1543
        %1545 = vmatmul.f32.gmra.mxu0 %v672
        %v1546 = vpop.f32.mrf.mxu0
        %v1547 = vadd.f32 %v1434, %v1546
        %1548 = vmatmul.f32.gmra.mxu0 %v753
        %v1549 = vpop.f32.mrf.mxu0
        %v1550 = vadd.f32 %v1437, %v1549
        %1551 = vmatmul.f32.gmra.mxu0 %v675
        %v1552 = vpop.f32.mrf.mxu0
        %v1553 = vadd.f32 %v1440, %v1552
        %1554 = vmatmul.f32.gmra.mxu0 %v754
        %v1555 = vpop.f32.mrf.mxu0
        %v1556 = vadd.f32 %v1443, %v1555
        %1557 = vmatmul.f32.gmra.mxu0 %v678
        %v1558 = vpop.f32.mrf.mxu0
        %v1559 = vadd.f32 %v1446, %v1558
        %1560 = vmatmul.f32.gmra.mxu0 %v755
        %v1561 = vpop.f32.mrf.mxu0
        %v1562 = vadd.f32 %v1449, %v1561
        %1563 = vmatmul.f32.gmra.mxu0 %v681
        %v1564 = vpop.f32.mrf.mxu0
        %v1565 = vadd.f32 %v1452, %v1564
        %1566 = vmatmul.f32.gmra.mxu0 %v756
        %v1567 = vpop.f32.mrf.mxu0
        %v1568 = vadd.f32 %v1455, %v1567
        %1569 = vmatmul.f32.gmra.mxu0 %v684
        %v1570 = vpop.f32.mrf.mxu0
        %v1571 = vadd.f32 %v1458, %v1570
        %1572 = vmatmul.f32.gmra.mxu0 %v757
        %v1573 = vpop.f32.mrf.mxu0
        %v1574 = vadd.f32 %v1461, %v1573
        %1575 = vmatmul.f32.gmra.mxu0 %v687
        %v1576 = vpop.f32.mrf.mxu0
        %v1577 = vadd.f32 %v1464, %v1576
        %1578 = vmatmul.f32.gmra.mxu0 %v758
        %v1579 = vpop.f32.mrf.mxu0
        %v1580 = vadd.f32 %v1467, %v1579
        %1581 = vmatmul.f32.gmra.mxu0 %v690
        %v1582 = vpop.f32.mrf.mxu0
        %v1583 = vadd.f32 %v1470, %v1582
        %1584 = vmatmul.f32.gmra.mxu0 %v759
        %v1585 = vpop.f32.mrf.mxu0
        %v1586 = vadd.f32 %v1473, %v1585
        %1587 = vmatmul.f32.gmra.mxu0 %v693
        %v1588 = vpop.f32.mrf.mxu0
        %v1589 = vadd.f32 %v1476, %v1588
        %1590 = vdwg.mxu0
        %1591 = vmatpush.msra.mxu0 %v1057
        %1592 = vmatpush.msra.mxu0 %v1056
        %1593 = vmatpush.msra.mxu0 %v1055
        %1594 = vmatpush.msra.mxu0 %v1054
        %1595 = vmatpush.msra.mxu0 %v1053
        %1596 = vmatpush.msra.mxu0 %v1052
        %1597 = vmatpush.msra.mxu0 %v1051
        %1598 = vmatpush.msra.mxu0 %v1050
        %1599 = vmatpush.msra.mxu0 %v1049
        %1600 = vmatpush.msra.mxu0 %v1048
        %1601 = vmatpush.msra.mxu0 %v1047
        %1602 = vmatpush.msra.mxu0 %v1046
        %1603 = vmatpush.msra.mxu0 %v1045
        %1604 = vmatpush.msra.mxu0 %v1044
        %1605 = vmatpush.msra.mxu0 %v1043
        %1606 = vmatpush.msra.mxu0 %v1042
        %1607 = vmatmul.f32.gmra.mxu0 %v810
        %v1608 = vpop.f32.mrf.mxu0
        %v1609 = vadd.f32 %v1496, %v1608
        %1610 = vmatmul.f32.gmra.mxu0 %v810
        %v1611 = vpop.f32.mrf.mxu0
        %v1612 = vadd.f32 %v1499, %v1611
        %1613 = vmatmul.f32.gmra.mxu0 %v813
        %v1614 = vpop.f32.mrf.mxu0
        %v1615 = vadd.f32 %v1502, %v1614
        %1616 = vmatmul.f32.gmra.mxu0 %v815
        %v1617 = vpop.f32.mrf.mxu0
        %v1618 = vadd.f32 %v1505, %v1617
        %1619 = vmatmul.f32.gmra.mxu0 %v818
        %v1620 = vpop.f32.mrf.mxu0
        %v1621 = vadd.f32 %v1508, %v1620
        %1622 = vmatmul.f32.gmra.mxu0 %v820
        %v1623 = vpop.f32.mrf.mxu0
        %v1624 = vadd.f32 %v1511, %v1623
        %1625 = vmatmul.f32.gmra.mxu0 %v823
        %v1626 = vpop.f32.mrf.mxu0
        %v1627 = vadd.f32 %v1514, %v1626
        %1628 = vmatmul.f32.gmra.mxu0 %v825
        %v1629 = vpop.f32.mrf.mxu0
        %v1630 = vadd.f32 %v1517, %v1629
        %1631 = vmatmul.f32.gmra.mxu0 %v828
        %v1632 = vpop.f32.mrf.mxu0
        %v1633 = vadd.f32 %v1520, %v1632
        %1634 = vmatmul.f32.gmra.mxu0 %v830
        %v1635 = vpop.f32.mrf.mxu0
        %v1636 = vadd.f32 %v1523, %v1635
        %1637 = vmatmul.f32.gmra.mxu0 %v833
        %v1638 = vpop.f32.mrf.mxu0
        %v1639 = vadd.f32 %v1526, %v1638
        %1640 = vmatmul.f32.gmra.mxu0 %v835
        %v1641 = vpop.f32.mrf.mxu0
        %v1642 = vadd.f32 %v1529, %v1641
        %1643 = vmatmul.f32.gmra.mxu0 %v838
        %v1644 = vpop.f32.mrf.mxu0
        %v1645 = vadd.f32 %v1532, %v1644
        %1646 = vmatmul.f32.gmra.mxu0 %v840
        %v1647 = vpop.f32.mrf.mxu0
        %v1648 = vadd.f32 %v1535, %v1647
        %1649 = vmatmul.f32.gmra.mxu0 %v843
        %v1650 = vpop.f32.mrf.mxu0
        %v1651 = vadd.f32 %v1538, %v1650
        %1652 = vmatmul.f32.gmra.mxu0 %v845
        %v1653 = vpop.f32.mrf.mxu0
        %v1654 = vadd.f32 %v1541, %v1653
        %1655 = vmatmul.f32.gmra.mxu0 %v848
        %v1656 = vpop.f32.mrf.mxu0
        %v1657 = vadd.f32 %v1544, %v1656
        %1658 = vmatmul.f32.gmra.mxu0 %v850
        %v1659 = vpop.f32.mrf.mxu0
        %v1660 = vadd.f32 %v1547, %v1659
        %1661 = vmatmul.f32.gmra.mxu0 %v853
        %v1662 = vpop.f32.mrf.mxu0
        %v1663 = vadd.f32 %v1550, %v1662
        %1664 = vmatmul.f32.gmra.mxu0 %v855
        %v1665 = vpop.f32.mrf.mxu0
        %v1666 = vadd.f32 %v1553, %v1665
        %1667 = vmatmul.f32.gmra.mxu0 %v858
        %v1668 = vpop.f32.mrf.mxu0
        %v1669 = vadd.f32 %v1556, %v1668
        %1670 = vmatmul.f32.gmra.mxu0 %v860
        %v1671 = vpop.f32.mrf.mxu0
        %v1672 = vadd.f32 %v1559, %v1671
        %1673 = vmatmul.f32.gmra.mxu0 %v863
        %v1674 = vpop.f32.mrf.mxu0
        %v1675 = vadd.f32 %v1562, %v1674
        %1676 = vmatmul.f32.gmra.mxu0 %v865
        %v1677 = vpop.f32.mrf.mxu0
        %v1678 = vadd.f32 %v1565, %v1677
        %1679 = vmatmul.f32.gmra.mxu0 %v868
        %v1680 = vpop.f32.mrf.mxu0
        %v1681 = vadd.f32 %v1568, %v1680
        %1682 = vmatmul.f32.gmra.mxu0 %v870
        %v1683 = vpop.f32.mrf.mxu0
        %v1684 = vadd.f32 %v1571, %v1683
        %1685 = vmatmul.f32.gmra.mxu0 %v873
        %v1686 = vpop.f32.mrf.mxu0
        %v1687 = vadd.f32 %v1574, %v1686
        %1688 = vmatmul.f32.gmra.mxu0 %v875
        %v1689 = vpop.f32.mrf.mxu0
        %v1690 = vadd.f32 %v1577, %v1689
        %1691 = vmatmul.f32.gmra.mxu0 %v878
        %v1692 = vpop.f32.mrf.mxu0
        %v1693 = vadd.f32 %v1580, %v1692
        %1694 = vmatmul.f32.gmra.mxu0 %v880
        %v1695 = vpop.f32.mrf.mxu0
        %v1696 = vadd.f32 %v1583, %v1695
        %1697 = vmatmul.f32.gmra.mxu0 %v883
        %v1698 = vpop.f32.mrf.mxu0
        %v1699 = vadd.f32 %v1586, %v1698
        %1700 = vmatmul.f32.gmra.mxu0 %v885
        %v1701 = vpop.f32.mrf.mxu0
        %v1702 = vadd.f32 %v1589, %v1701
        %1703 = vdwg.mxu0
        %1704 = vmatpush.msra.mxu0 %v1073
        %1705 = vmatpush.msra.mxu0 %v1072
        %1706 = vmatpush.msra.mxu0 %v1071
        %1707 = vmatpush.msra.mxu0 %v1070
        %1708 = vmatpush.msra.mxu0 %v1069
        %1709 = vmatpush.msra.mxu0 %v1068
        %1710 = vmatpush.msra.mxu0 %v1067
        %1711 = vmatpush.msra.mxu0 %v1066
        %1712 = vmatpush.msra.mxu0 %v1065
        %1713 = vmatpush.msra.mxu0 %v1064
        %1714 = vmatpush.msra.mxu0 %v1063
        %1715 = vmatpush.msra.mxu0 %v1062
        %1716 = vmatpush.msra.mxu0 %v1061
        %1717 = vmatpush.msra.mxu0 %v1060
        %1718 = vmatpush.msra.mxu0 %v1059
        %1719 = vmatpush.msra.mxu0 %v1058
        %1720 = vmatmul.f32.gmra.mxu0 %v919
        %v1721 = vpop.f32.mrf.mxu0
        %v1722 = vadd.f32 %v1609, %v1721
        %1723 = vmatmul.f32.gmra.mxu0 %v919
        %v1724 = vpop.f32.mrf.mxu0
        %v1725 = vadd.f32 %v1612, %v1724
        %1726 = vmatmul.f32.gmra.mxu0 %v922
        %v1727 = vpop.f32.mrf.mxu0
        %v1728 = vadd.f32 %v1615, %v1727
        %1729 = vmatmul.f32.gmra.mxu0 %v924
        %v1730 = vpop.f32.mrf.mxu0
        %v1731 = vadd.f32 %v1618, %v1730
        %1732 = vmatmul.f32.gmra.mxu0 %v927
        %v1733 = vpop.f32.mrf.mxu0
        %v1734 = vadd.f32 %v1621, %v1733
        %1735 = vmatmul.f32.gmra.mxu0 %v929
        %v1736 = vpop.f32.mrf.mxu0
        %v1737 = vadd.f32 %v1624, %v1736
        %1738 = vmatmul.f32.gmra.mxu0 %v932
        %v1739 = vpop.f32.mrf.mxu0
        %v1740 = vadd.f32 %v1627, %v1739
        %1741 = vmatmul.f32.gmra.mxu0 %v934
        %v1742 = vpop.f32.mrf.mxu0
        %v1743 = vadd.f32 %v1630, %v1742
        %1744 = vmatmul.f32.gmra.mxu0 %v937
        %v1745 = vpop.f32.mrf.mxu0
        %v1746 = vadd.f32 %v1633, %v1745
        %1747 = vmatmul.f32.gmra.mxu0 %v939
        %v1748 = vpop.f32.mrf.mxu0
        %v1749 = vadd.f32 %v1636, %v1748
        %1750 = vmatmul.f32.gmra.mxu0 %v942
        %v1751 = vpop.f32.mrf.mxu0
        %v1752 = vadd.f32 %v1639, %v1751
        %1753 = vmatmul.f32.gmra.mxu0 %v944
        %v1754 = vpop.f32.mrf.mxu0
        %v1755 = vadd.f32 %v1642, %v1754
        %1756 = vmatmul.f32.gmra.mxu0 %v947
        %v1757 = vpop.f32.mrf.mxu0
        %v1758 = vadd.f32 %v1645, %v1757
        %1759 = vmatmul.f32.gmra.mxu0 %v949
        %v1760 = vpop.f32.mrf.mxu0
        %v1761 = vadd.f32 %v1648, %v1760
        %1762 = vmatmul.f32.gmra.mxu0 %v952
        %v1763 = vpop.f32.mrf.mxu0
        %v1764 = vadd.f32 %v1651, %v1763
        %1765 = vmatmul.f32.gmra.mxu0 %v954
        %v1766 = vpop.f32.mrf.mxu0
        %v1767 = vadd.f32 %v1654, %v1766
        %1768 = vmatmul.f32.gmra.mxu0 %v957
        %v1769 = vpop.f32.mrf.mxu0
        %v1770 = vadd.f32 %v1657, %v1769
        %1771 = vmatmul.f32.gmra.mxu0 %v959
        %v1772 = vpop.f32.mrf.mxu0
        %v1773 = vadd.f32 %v1660, %v1772
        %1774 = vmatmul.f32.gmra.mxu0 %v962
        %v1775 = vpop.f32.mrf.mxu0
        %v1776 = vadd.f32 %v1663, %v1775
        %1777 = vmatmul.f32.gmra.mxu0 %v964
        %v1778 = vpop.f32.mrf.mxu0
        %v1779 = vadd.f32 %v1666, %v1778
        %1780 = vmatmul.f32.gmra.mxu0 %v967
        %v1781 = vpop.f32.mrf.mxu0
        %v1782 = vadd.f32 %v1669, %v1781
        %1783 = vmatmul.f32.gmra.mxu0 %v969
        %v1784 = vpop.f32.mrf.mxu0
        %v1785 = vadd.f32 %v1672, %v1784
        %1786 = vmatmul.f32.gmra.mxu0 %v972
        %v1787 = vpop.f32.mrf.mxu0
        %v1788 = vadd.f32 %v1675, %v1787
        %1789 = vmatmul.f32.gmra.mxu0 %v974
        %v1790 = vpop.f32.mrf.mxu0
        %v1791 = vadd.f32 %v1678, %v1790
        %1792 = vmatmul.f32.gmra.mxu0 %v977
        %v1793 = vpop.f32.mrf.mxu0
        %v1794 = vadd.f32 %v1681, %v1793
        %1795 = vmatmul.f32.gmra.mxu0 %v979
        %v1796 = vpop.f32.mrf.mxu0
        %v1797 = vadd.f32 %v1684, %v1796
        %1798 = vmatmul.f32.gmra.mxu0 %v982
        %v1799 = vpop.f32.mrf.mxu0
        %v1800 = vadd.f32 %v1687, %v1799
        %1801 = vmatmul.f32.gmra.mxu0 %v984
        %v1802 = vpop.f32.mrf.mxu0
        %v1803 = vadd.f32 %v1690, %v1802
        %1804 = vmatmul.f32.gmra.mxu0 %v987
        %v1805 = vpop.f32.mrf.mxu0
        %v1806 = vadd.f32 %v1693, %v1805
        %1807 = vmatmul.f32.gmra.mxu0 %v989
        %v1808 = vpop.f32.mrf.mxu0
        %v1809 = vadd.f32 %v1696, %v1808
        %1810 = vmatmul.f32.gmra.mxu0 %v992
        %v1811 = vpop.f32.mrf.mxu0
        %v1812 = vadd.f32 %v1699, %v1811
        %1813 = vmatmul.f32.gmra.mxu0 %v994
        %v1814 = vpop.f32.mrf.mxu0
        %v1815 = vadd.f32 %v1702, %v1814
        %1816 = vdwg.mxu0
        %s1817 = scalar_lea.vmem [#allocation7], 768
        %v1818 = vld [vmem:[%s1817] sm:$0xff]
        %v1819 = vld [vmem:[%s1817 + $0x8] sm:$0xff]
        %v1820 = vld [vmem:[%s1817 + $0x10] sm:$0xff]
        %v1821 = vld [vmem:[%s1817 + $0x18] sm:$0xff]
        %v1822 = vld [vmem:[%s1817 + $0x20] sm:$0xff]
        %v1823 = vld [vmem:[%s1817 + $0x28] sm:$0xff]
        %v1824 = vld [vmem:[%s1817 + $0x30] sm:$0xff]
        %v1825 = vld [vmem:[%s1817 + $0x38] sm:$0xff]
        %v1826 = vld [vmem:[%s1817 + $0x40] sm:$0xff]
        %v1827 = vld [vmem:[%s1817 + $0x48] sm:$0xff]
        %v1828 = vld [vmem:[%s1817 + $0x50] sm:$0xff]
        %v1829 = vld [vmem:[%s1817 + $0x58] sm:$0xff]
        %v1830 = vld [vmem:[%s1817 + $0x60] sm:$0xff]
        %v1831 = vld [vmem:[%s1817 + $0x68] sm:$0xff]
        %v1832 = vld [vmem:[%s1817 + $0x70] sm:$0xff]
        %v1833 = vld [vmem:[%s1817 + $0x78] sm:$0xff]
        %v1834 = vld [vmem:[%s1817 + $0x80] sm:$0xff]
        %v1835 = vld [vmem:[%s1817 + $0x88] sm:$0xff]
        %v1836 = vld [vmem:[%s1817 + $0x90] sm:$0xff]
        %v1837 = vld [vmem:[%s1817 + $0x98] sm:$0xff]
        %v1838 = vld [vmem:[%s1817 + $0xa0] sm:$0xff]
        %v1839 = vld [vmem:[%s1817 + $0xa8] sm:$0xff]
        %v1840 = vld [vmem:[%s1817 + $0xb0] sm:$0xff]
        %v1841 = vld [vmem:[%s1817 + $0xb8] sm:$0xff]
        %v1842 = vld [vmem:[%s1817 + $0xc0] sm:$0xff]
        %v1843 = vld [vmem:[%s1817 + $0xc8] sm:$0xff]
        %v1844 = vld [vmem:[%s1817 + $0xd0] sm:$0xff]
        %v1845 = vld [vmem:[%s1817 + $0xd8] sm:$0xff]
        %v1846 = vld [vmem:[%s1817 + $0xe0] sm:$0xff]
        %v1847 = vld [vmem:[%s1817 + $0xe8] sm:$0xff]
        %v1848 = vld [vmem:[%s1817 + $0xf0] sm:$0xff]
        %v1849 = vld [vmem:[%s1817 + $0xf8] sm:$0xff]
        %v1850 = vld [vmem:[%s1817 + $0x100] sm:$0xff]
        %v1851 = vld [vmem:[%s1817 + $0x108] sm:$0xff]
        %v1852 = vld [vmem:[%s1817 + $0x110] sm:$0xff]
        %v1853 = vld [vmem:[%s1817 + $0x118] sm:$0xff]
        %v1854 = vld [vmem:[%s1817 + $0x120] sm:$0xff]
        %v1855 = vld [vmem:[%s1817 + $0x128] sm:$0xff]
        %v1856 = vld [vmem:[%s1817 + $0x130] sm:$0xff]
        %v1857 = vld [vmem:[%s1817 + $0x138] sm:$0xff]
        %v1858 = vld [vmem:[%s1817 + $0x140] sm:$0xff]
        %v1859 = vld [vmem:[%s1817 + $0x148] sm:$0xff]
        %v1860 = vld [vmem:[%s1817 + $0x150] sm:$0xff]
        %v1861 = vld [vmem:[%s1817 + $0x158] sm:$0xff]
        %v1862 = vld [vmem:[%s1817 + $0x160] sm:$0xff]
        %v1863 = vld [vmem:[%s1817 + $0x168] sm:$0xff]
        %v1864 = vld [vmem:[%s1817 + $0x170] sm:$0xff]
        %v1865 = vld [vmem:[%s1817 + $0x178] sm:$0xff]
        %1866 = vmatpush.msra.mxu0 %v1833
        %1867 = vmatpush.msra.mxu0 %v1832
        %1868 = vmatpush.msra.mxu0 %v1831
        %1869 = vmatpush.msra.mxu0 %v1830
        %1870 = vmatpush.msra.mxu0 %v1829
        %1871 = vmatpush.msra.mxu0 %v1828
        %1872 = vmatpush.msra.mxu0 %v1827
        %1873 = vmatpush.msra.mxu0 %v1826
        %1874 = vmatpush.msra.mxu0 %v1825
        %1875 = vmatpush.msra.mxu0 %v1824
        %1876 = vmatpush.msra.mxu0 %v1823
        %1877 = vmatpush.msra.mxu0 %v1822
        %1878 = vmatpush.msra.mxu0 %v1821
        %1879 = vmatpush.msra.mxu0 %v1820
        %1880 = vmatpush.msra.mxu0 %v1819
        %1881 = vmatpush.msra.mxu0 %v1818
        %1882 = vmatmul.f32.gmra.mxu0 %v746
        %v1883 = vpop.f32.mrf.mxu0
        %v1884 = vadd.f32 0.0, %v1883
        %1885 = vmatmul.f32.gmra.mxu0 %v654
        %v1886 = vpop.f32.mrf.mxu0
        %v1887 = vadd.f32 0.0, %v1886
        %1888 = vmatmul.f32.gmra.mxu0 %v747
        %v1889 = vpop.f32.mrf.mxu0
        %v1890 = vadd.f32 0.0, %v1889
        %1891 = vmatmul.f32.gmra.mxu0 %v657
        %v1892 = vpop.f32.mrf.mxu0
        %v1893 = vadd.f32 0.0, %v1892
        %1894 = vmatmul.f32.gmra.mxu0 %v748
        %v1895 = vpop.f32.mrf.mxu0
        %v1896 = vadd.f32 0.0, %v1895
        %1897 = vmatmul.f32.gmra.mxu0 %v660
        %v1898 = vpop.f32.mrf.mxu0
        %v1899 = vadd.f32 0.0, %v1898
        %1900 = vmatmul.f32.gmra.mxu0 %v749
        %v1901 = vpop.f32.mrf.mxu0
        %v1902 = vadd.f32 0.0, %v1901
        %1903 = vmatmul.f32.gmra.mxu0 %v663
        %v1904 = vpop.f32.mrf.mxu0
        %v1905 = vadd.f32 0.0, %v1904
        %1906 = vmatmul.f32.gmra.mxu0 %v750
        %v1907 = vpop.f32.mrf.mxu0
        %v1908 = vadd.f32 0.0, %v1907
        %1909 = vmatmul.f32.gmra.mxu0 %v666
        %v1910 = vpop.f32.mrf.mxu0
        %v1911 = vadd.f32 0.0, %v1910
        %1912 = vmatmul.f32.gmra.mxu0 %v751
        %v1913 = vpop.f32.mrf.mxu0
        %v1914 = vadd.f32 0.0, %v1913
        %1915 = vmatmul.f32.gmra.mxu0 %v669
        %v1916 = vpop.f32.mrf.mxu0
        %v1917 = vadd.f32 0.0, %v1916
        %1918 = vmatmul.f32.gmra.mxu0 %v752
        %v1919 = vpop.f32.mrf.mxu0
        %v1920 = vadd.f32 0.0, %v1919
        %1921 = vmatmul.f32.gmra.mxu0 %v672
        %v1922 = vpop.f32.mrf.mxu0
        %v1923 = vadd.f32 0.0, %v1922
        %1924 = vmatmul.f32.gmra.mxu0 %v753
        %v1925 = vpop.f32.mrf.mxu0
        %v1926 = vadd.f32 0.0, %v1925
        %1927 = vmatmul.f32.gmra.mxu0 %v675
        %v1928 = vpop.f32.mrf.mxu0
        %v1929 = vadd.f32 0.0, %v1928
        %1930 = vmatmul.f32.gmra.mxu0 %v754
        %v1931 = vpop.f32.mrf.mxu0
        %v1932 = vadd.f32 0.0, %v1931
        %1933 = vmatmul.f32.gmra.mxu0 %v678
        %v1934 = vpop.f32.mrf.mxu0
        %v1935 = vadd.f32 0.0, %v1934
        %1936 = vmatmul.f32.gmra.mxu0 %v755
        %v1937 = vpop.f32.mrf.mxu0
        %v1938 = vadd.f32 0.0, %v1937
        %1939 = vmatmul.f32.gmra.mxu0 %v681
        %v1940 = vpop.f32.mrf.mxu0
        %v1941 = vadd.f32 0.0, %v1940
        %1942 = vmatmul.f32.gmra.mxu0 %v756
        %v1943 = vpop.f32.mrf.mxu0
        %v1944 = vadd.f32 0.0, %v1943
        %1945 = vmatmul.f32.gmra.mxu0 %v684
        %v1946 = vpop.f32.mrf.mxu0
        %v1947 = vadd.f32 0.0, %v1946
        %1948 = vmatmul.f32.gmra.mxu0 %v757
        %v1949 = vpop.f32.mrf.mxu0
        %v1950 = vadd.f32 0.0, %v1949
        %1951 = vmatmul.f32.gmra.mxu0 %v687
        %v1952 = vpop.f32.mrf.mxu0
        %v1953 = vadd.f32 0.0, %v1952
        %1954 = vmatmul.f32.gmra.mxu0 %v758
        %v1955 = vpop.f32.mrf.mxu0
        %v1956 = vadd.f32 0.0, %v1955
        %1957 = vmatmul.f32.gmra.mxu0 %v690
        %v1958 = vpop.f32.mrf.mxu0
        %v1959 = vadd.f32 0.0, %v1958
        %1960 = vmatmul.f32.gmra.mxu0 %v759
        %v1961 = vpop.f32.mrf.mxu0
        %v1962 = vadd.f32 0.0, %v1961
        %1963 = vmatmul.f32.gmra.mxu0 %v693
        %v1964 = vpop.f32.mrf.mxu0
        %v1965 = vadd.f32 0.0, %v1964
        %1966 = vmatmul.f32.gmra.mxu0 %v760
        %v1967 = vpop.f32.mrf.mxu0
        %v1968 = vadd.f32 0.0, %v1967
        %1969 = vmatmul.f32.gmra.mxu0 %v696
        %v1970 = vpop.f32.mrf.mxu0
        %v1971 = vadd.f32 0.0, %v1970
        %1972 = vmatmul.f32.gmra.mxu0 0.0
        %v1973 = vpop.f32.mrf.mxu0
        %v1974 = vadd.f32 0.0, %v1973
        %1975 = vmatmul.f32.gmra.mxu0 0.0
        %v1976 = vpop.f32.mrf.mxu0
        %v1977 = vadd.f32 0.0, %v1976
        %1978 = vdwg.mxu0
        %1979 = vmatpush.msra.mxu0 %v1849
        %1980 = vmatpush.msra.mxu0 %v1848
        %1981 = vmatpush.msra.mxu0 %v1847
        %1982 = vmatpush.msra.mxu0 %v1846
        %1983 = vmatpush.msra.mxu0 %v1845
        %1984 = vmatpush.msra.mxu0 %v1844
        %1985 = vmatpush.msra.mxu0 %v1843
        %1986 = vmatpush.msra.mxu0 %v1842
        %1987 = vmatpush.msra.mxu0 %v1841
        %1988 = vmatpush.msra.mxu0 %v1840
        %1989 = vmatpush.msra.mxu0 %v1839
        %1990 = vmatpush.msra.mxu0 %v1838
        %1991 = vmatpush.msra.mxu0 %v1837
        %1992 = vmatpush.msra.mxu0 %v1836
        %1993 = vmatpush.msra.mxu0 %v1835
        %1994 = vmatpush.msra.mxu0 %v1834
        %1995 = vmatmul.f32.gmra.mxu0 %v818
        %v1996 = vpop.f32.mrf.mxu0
        %v1997 = vadd.f32 %v1884, %v1996
        %1998 = vmatmul.f32.gmra.mxu0 %v820
        %v1999 = vpop.f32.mrf.mxu0
        %v2000 = vadd.f32 %v1887, %v1999
        %2001 = vmatmul.f32.gmra.mxu0 %v823
        %v2002 = vpop.f32.mrf.mxu0
        %v2003 = vadd.f32 %v1890, %v2002
        %2004 = vmatmul.f32.gmra.mxu0 %v825
        %v2005 = vpop.f32.mrf.mxu0
        %v2006 = vadd.f32 %v1893, %v2005
        %2007 = vmatmul.f32.gmra.mxu0 %v828
        %v2008 = vpop.f32.mrf.mxu0
        %v2009 = vadd.f32 %v1896, %v2008
        %2010 = vmatmul.f32.gmra.mxu0 %v830
        %v2011 = vpop.f32.mrf.mxu0
        %v2012 = vadd.f32 %v1899, %v2011
        %2013 = vmatmul.f32.gmra.mxu0 %v833
        %v2014 = vpop.f32.mrf.mxu0
        %v2015 = vadd.f32 %v1902, %v2014
        %2016 = vmatmul.f32.gmra.mxu0 %v835
        %v2017 = vpop.f32.mrf.mxu0
        %v2018 = vadd.f32 %v1905, %v2017
        %2019 = vmatmul.f32.gmra.mxu0 %v838
        %v2020 = vpop.f32.mrf.mxu0
        %v2021 = vadd.f32 %v1908, %v2020
        %2022 = vmatmul.f32.gmra.mxu0 %v840
        %v2023 = vpop.f32.mrf.mxu0
        %v2024 = vadd.f32 %v1911, %v2023
        %2025 = vmatmul.f32.gmra.mxu0 %v843
        %v2026 = vpop.f32.mrf.mxu0
        %v2027 = vadd.f32 %v1914, %v2026
        %2028 = vmatmul.f32.gmra.mxu0 %v845
        %v2029 = vpop.f32.mrf.mxu0
        %v2030 = vadd.f32 %v1917, %v2029
        %2031 = vmatmul.f32.gmra.mxu0 %v848
        %v2032 = vpop.f32.mrf.mxu0
        %v2033 = vadd.f32 %v1920, %v2032
        %2034 = vmatmul.f32.gmra.mxu0 %v850
        %v2035 = vpop.f32.mrf.mxu0
        %v2036 = vadd.f32 %v1923, %v2035
        %2037 = vmatmul.f32.gmra.mxu0 %v853
        %v2038 = vpop.f32.mrf.mxu0
        %v2039 = vadd.f32 %v1926, %v2038
        %2040 = vmatmul.f32.gmra.mxu0 %v855
        %v2041 = vpop.f32.mrf.mxu0
        %v2042 = vadd.f32 %v1929, %v2041
        %2043 = vmatmul.f32.gmra.mxu0 %v858
        %v2044 = vpop.f32.mrf.mxu0
        %v2045 = vadd.f32 %v1932, %v2044
        %2046 = vmatmul.f32.gmra.mxu0 %v860
        %v2047 = vpop.f32.mrf.mxu0
        %v2048 = vadd.f32 %v1935, %v2047
        %2049 = vmatmul.f32.gmra.mxu0 %v863
        %v2050 = vpop.f32.mrf.mxu0
        %v2051 = vadd.f32 %v1938, %v2050
        %2052 = vmatmul.f32.gmra.mxu0 %v865
        %v2053 = vpop.f32.mrf.mxu0
        %v2054 = vadd.f32 %v1941, %v2053
        %2055 = vmatmul.f32.gmra.mxu0 %v868
        %v2056 = vpop.f32.mrf.mxu0
        %v2057 = vadd.f32 %v1944, %v2056
        %2058 = vmatmul.f32.gmra.mxu0 %v870
        %v2059 = vpop.f32.mrf.mxu0
        %v2060 = vadd.f32 %v1947, %v2059
        %2061 = vmatmul.f32.gmra.mxu0 %v873
        %v2062 = vpop.f32.mrf.mxu0
        %v2063 = vadd.f32 %v1950, %v2062
        %2064 = vmatmul.f32.gmra.mxu0 %v875
        %v2065 = vpop.f32.mrf.mxu0
        %v2066 = vadd.f32 %v1953, %v2065
        %2067 = vmatmul.f32.gmra.mxu0 %v878
        %v2068 = vpop.f32.mrf.mxu0
        %v2069 = vadd.f32 %v1956, %v2068
        %2070 = vmatmul.f32.gmra.mxu0 %v880
        %v2071 = vpop.f32.mrf.mxu0
        %v2072 = vadd.f32 %v1959, %v2071
        %2073 = vmatmul.f32.gmra.mxu0 %v883
        %v2074 = vpop.f32.mrf.mxu0
        %v2075 = vadd.f32 %v1962, %v2074
        %2076 = vmatmul.f32.gmra.mxu0 %v885
        %v2077 = vpop.f32.mrf.mxu0
        %v2078 = vadd.f32 %v1965, %v2077
        %2079 = vmatmul.f32.gmra.mxu0 %v1078
        %v2080 = vpop.f32.mrf.mxu0
        %v2081 = vadd.f32 %v1968, %v2080
        %2082 = vmatmul.f32.gmra.mxu0 %v1080
        %v2083 = vpop.f32.mrf.mxu0
        %v2084 = vadd.f32 %v1971, %v2083
        %2085 = vmatmul.f32.gmra.mxu0 %v810
        %v2086 = vpop.f32.mrf.mxu0
        %v2087 = vadd.f32 %v1974, %v2086
        %2088 = vmatmul.f32.gmra.mxu0 %v810
        %v2089 = vpop.f32.mrf.mxu0
        %v2090 = vadd.f32 %v1977, %v2089
        %2091 = vdwg.mxu0
        %2092 = vmatpush.msra.mxu0 %v1865
        %2093 = vmatpush.msra.mxu0 %v1864
        %2094 = vmatpush.msra.mxu0 %v1863
        %2095 = vmatpush.msra.mxu0 %v1862
        %2096 = vmatpush.msra.mxu0 %v1861
        %2097 = vmatpush.msra.mxu0 %v1860
        %2098 = vmatpush.msra.mxu0 %v1859
        %2099 = vmatpush.msra.mxu0 %v1858
        %2100 = vmatpush.msra.mxu0 %v1857
        %2101 = vmatpush.msra.mxu0 %v1856
        %2102 = vmatpush.msra.mxu0 %v1855
        %2103 = vmatpush.msra.mxu0 %v1854
        %2104 = vmatpush.msra.mxu0 %v1853
        %2105 = vmatpush.msra.mxu0 %v1852
        %2106 = vmatpush.msra.mxu0 %v1851
        %2107 = vmatpush.msra.mxu0 %v1850
        %2108 = vmatmul.f32.gmra.mxu0 %v927
        %v2109 = vpop.f32.mrf.mxu0
        %v2110 = vadd.f32 %v1997, %v2109
        %2111 = vmatmul.f32.gmra.mxu0 %v929
        %v2112 = vpop.f32.mrf.mxu0
        %v2113 = vadd.f32 %v2000, %v2112
        %2114 = vmatmul.f32.gmra.mxu0 %v932
        %v2115 = vpop.f32.mrf.mxu0
        %v2116 = vadd.f32 %v2003, %v2115
        %2117 = vmatmul.f32.gmra.mxu0 %v934
        %v2118 = vpop.f32.mrf.mxu0
        %v2119 = vadd.f32 %v2006, %v2118
        %2120 = vmatmul.f32.gmra.mxu0 %v937
        %v2121 = vpop.f32.mrf.mxu0
        %v2122 = vadd.f32 %v2009, %v2121
        %2123 = vmatmul.f32.gmra.mxu0 %v939
        %v2124 = vpop.f32.mrf.mxu0
        %v2125 = vadd.f32 %v2012, %v2124
        %2126 = vmatmul.f32.gmra.mxu0 %v942
        %v2127 = vpop.f32.mrf.mxu0
        %v2128 = vadd.f32 %v2015, %v2127
        %2129 = vmatmul.f32.gmra.mxu0 %v944
        %v2130 = vpop.f32.mrf.mxu0
        %v2131 = vadd.f32 %v2018, %v2130
        %2132 = vmatmul.f32.gmra.mxu0 %v947
        %v2133 = vpop.f32.mrf.mxu0
        %v2134 = vadd.f32 %v2021, %v2133
        %2135 = vmatmul.f32.gmra.mxu0 %v949
        %v2136 = vpop.f32.mrf.mxu0
        %v2137 = vadd.f32 %v2024, %v2136
        %2138 = vmatmul.f32.gmra.mxu0 %v952
        %v2139 = vpop.f32.mrf.mxu0
        %v2140 = vadd.f32 %v2027, %v2139
        %2141 = vmatmul.f32.gmra.mxu0 %v954
        %v2142 = vpop.f32.mrf.mxu0
        %v2143 = vadd.f32 %v2030, %v2142
        %2144 = vmatmul.f32.gmra.mxu0 %v957
        %v2145 = vpop.f32.mrf.mxu0
        %v2146 = vadd.f32 %v2033, %v2145
        %2147 = vmatmul.f32.gmra.mxu0 %v959
        %v2148 = vpop.f32.mrf.mxu0
        %v2149 = vadd.f32 %v2036, %v2148
        %2150 = vmatmul.f32.gmra.mxu0 %v962
        %v2151 = vpop.f32.mrf.mxu0
        %v2152 = vadd.f32 %v2039, %v2151
        %2153 = vmatmul.f32.gmra.mxu0 %v964
        %v2154 = vpop.f32.mrf.mxu0
        %v2155 = vadd.f32 %v2042, %v2154
        %2156 = vmatmul.f32.gmra.mxu0 %v967
        %v2157 = vpop.f32.mrf.mxu0
        %v2158 = vadd.f32 %v2045, %v2157
        %2159 = vmatmul.f32.gmra.mxu0 %v969
        %v2160 = vpop.f32.mrf.mxu0
        %v2161 = vadd.f32 %v2048, %v2160
        %2162 = vmatmul.f32.gmra.mxu0 %v972
        %v2163 = vpop.f32.mrf.mxu0
        %v2164 = vadd.f32 %v2051, %v2163
        %2165 = vmatmul.f32.gmra.mxu0 %v974
        %v2166 = vpop.f32.mrf.mxu0
        %v2167 = vadd.f32 %v2054, %v2166
        %2168 = vmatmul.f32.gmra.mxu0 %v977
        %v2169 = vpop.f32.mrf.mxu0
        %v2170 = vadd.f32 %v2057, %v2169
        %2171 = vmatmul.f32.gmra.mxu0 %v979
        %v2172 = vpop.f32.mrf.mxu0
        %v2173 = vadd.f32 %v2060, %v2172
        %2174 = vmatmul.f32.gmra.mxu0 %v982
        %v2175 = vpop.f32.mrf.mxu0
        %v2176 = vadd.f32 %v2063, %v2175
        %2177 = vmatmul.f32.gmra.mxu0 %v984
        %v2178 = vpop.f32.mrf.mxu0
        %v2179 = vadd.f32 %v2066, %v2178
        %2180 = vmatmul.f32.gmra.mxu0 %v987
        %v2181 = vpop.f32.mrf.mxu0
        %v2182 = vadd.f32 %v2069, %v2181
        %2183 = vmatmul.f32.gmra.mxu0 %v989
        %v2184 = vpop.f32.mrf.mxu0
        %v2185 = vadd.f32 %v2072, %v2184
        %2186 = vmatmul.f32.gmra.mxu0 %v992
        %v2187 = vpop.f32.mrf.mxu0
        %v2188 = vadd.f32 %v2075, %v2187
        %2189 = vmatmul.f32.gmra.mxu0 %v994
        %v2190 = vpop.f32.mrf.mxu0
        %v2191 = vadd.f32 %v2078, %v2190
        %2192 = vmatmul.f32.gmra.mxu0 %v1085
        %v2193 = vpop.f32.mrf.mxu0
        %v2194 = vadd.f32 %v2081, %v2193
        %2195 = vmatmul.f32.gmra.mxu0 %v1087
        %v2196 = vpop.f32.mrf.mxu0
        %v2197 = vadd.f32 %v2084, %v2196
        %2198 = vmatmul.f32.gmra.mxu0 %v919
        %v2199 = vpop.f32.mrf.mxu0
        %v2200 = vadd.f32 %v2087, %v2199
        %2201 = vmatmul.f32.gmra.mxu0 %v919
        %v2202 = vpop.f32.mrf.mxu0
        %v2203 = vadd.f32 %v2090, %v2202
        %2204 = vdwg.mxu0
        %v2205 = vadd.f32 %v1722, %v2110
        %v2206 = vadd.f32 %v1725, %v2113
        %v2207 = vadd.f32 %v1728, %v2116
        %v2208 = vadd.f32 %v1731, %v2119
        %v2209 = vadd.f32 %v1734, %v2122
        %v2210 = vadd.f32 %v1737, %v2125
        %v2211 = vadd.f32 %v1740, %v2128
        %v2212 = vadd.f32 %v1743, %v2131
        %v2213 = vadd.f32 %v1746, %v2134
        %v2214 = vadd.f32 %v1749, %v2137
        %v2215 = vadd.f32 %v1752, %v2140
        %v2216 = vadd.f32 %v1755, %v2143
        %v2217 = vadd.f32 %v1758, %v2146
        %v2218 = vadd.f32 %v1761, %v2149
        %v2219 = vadd.f32 %v1764, %v2152
        %v2220 = vadd.f32 %v1767, %v2155
        %v2221 = vadd.f32 %v1770, %v2158
        %v2222 = vadd.f32 %v1773, %v2161
        %v2223 = vadd.f32 %v1776, %v2164
        %v2224 = vadd.f32 %v1779, %v2167
        %v2225 = vadd.f32 %v1782, %v2170
        %v2226 = vadd.f32 %v1785, %v2173
        %v2227 = vadd.f32 %v1788, %v2176
        %v2228 = vadd.f32 %v1791, %v2179
        %v2229 = vadd.f32 %v1794, %v2182
        %v2230 = vadd.f32 %v1797, %v2185
        %v2231 = vadd.f32 %v1800, %v2188
        %v2232 = vadd.f32 %v1803, %v2191
        %v2233 = vadd.f32 %v1806, %v2194
        %v2234 = vadd.f32 %v1809, %v2197
        %v2235 = vadd.f32 %v1812, %v2200
        %v2236 = vadd.f32 %v1815, %v2203
        %v2237 = vld [vmem:[%s5] sm:$0x1]
        %v2239 = vperm.slane %v2237, 0
        %v2241 = vadd.f32 %v2205, %v2239
        %v2242 = vadd.f32 %v2206, %v2239
        %v2243 = vadd.f32 %v2207, %v2239
        %v2244 = vadd.f32 %v2208, %v2239
        %v2245 = vadd.f32 %v2209, %v2239
        %v2246 = vadd.f32 %v2210, %v2239
        %v2247 = vadd.f32 %v2211, %v2239
        %v2248 = vadd.f32 %v2212, %v2239
        %v2249 = vadd.f32 %v2213, %v2239
        %v2250 = vadd.f32 %v2214, %v2239
        %v2251 = vadd.f32 %v2215, %v2239
        %v2252 = vadd.f32 %v2216, %v2239
        %v2253 = vadd.f32 %v2217, %v2239
        %v2254 = vadd.f32 %v2218, %v2239
        %v2255 = vadd.f32 %v2219, %v2239
        %v2256 = vadd.f32 %v2220, %v2239
        %v2257 = vadd.f32 %v2221, %v2239
        %v2258 = vadd.f32 %v2222, %v2239
        %v2259 = vadd.f32 %v2223, %v2239
        %v2260 = vadd.f32 %v2224, %v2239
        %v2261 = vadd.f32 %v2225, %v2239
        %v2262 = vadd.f32 %v2226, %v2239
        %v2263 = vadd.f32 %v2227, %v2239
        %v2264 = vadd.f32 %v2228, %v2239
        %v2265 = vadd.f32 %v2229, %v2239
        %v2266 = vadd.f32 %v2230, %v2239
        %v2267 = vadd.f32 %v2231, %v2239
        %v2268 = vadd.f32 %v2232, %v2239
        %v2269 = vadd.f32 %v2233, %v2239
        %v2270 = vadd.f32 %v2234, %v2239
        %v2271 = vadd.f32 %v2235, %v2239
        %v2272 = vadd.f32 %v2236, %v2239
        %v2273 = vld [vmem:[#allocation8] sm:$0xff]
        %v2274 = vld [vmem:[#allocation8 + $0x8] sm:$0xff]
        %v2275 = vld [vmem:[#allocation8 + $0x10] sm:$0xff]
        %v2276 = vld [vmem:[#allocation8 + $0x18] sm:$0xff]
        %v2277 = vld [vmem:[#allocation8 + $0x20] sm:$0xff]
        %v2278 = vld [vmem:[#allocation8 + $0x28] sm:$0xff]
        %v2279 = vld [vmem:[#allocation8 + $0x30] sm:$0xff]
        %v2280 = vld [vmem:[#allocation8 + $0x38] sm:$0xff]
        %v2281 = vld [vmem:[#allocation8 + $0x40] sm:$0xff]
        %v2282 = vld [vmem:[#allocation8 + $0x48] sm:$0xff]
        %v2283 = vld [vmem:[#allocation8 + $0x50] sm:$0xff]
        %v2284 = vld [vmem:[#allocation8 + $0x58] sm:$0xff]
        %v2285 = vld [vmem:[#allocation8 + $0x60] sm:$0xff]
        %v2286 = vld [vmem:[#allocation8 + $0x68] sm:$0xff]
        %v2287 = vld [vmem:[#allocation8 + $0x70] sm:$0xff]
        %v2288 = vld [vmem:[#allocation8 + $0x78] sm:$0xff]
        %v2289 = vld [vmem:[%s6] sm:$0x1]
        %v2291 = vperm.slane %v2289, 0
        %2293 = vmatpush.msra.mxu0 %v2288
        %2294 = vmatpush.msra.mxu0 %v2287
        %2295 = vmatpush.msra.mxu0 %v2286
        %2296 = vmatpush.msra.mxu0 %v2285
        %2297 = vmatpush.msra.mxu0 %v2284
        %2298 = vmatpush.msra.mxu0 %v2283
        %2299 = vmatpush.msra.mxu0 %v2282
        %2300 = vmatpush.msra.mxu0 %v2281
        %2301 = vmatpush.msra.mxu0 %v2280
        %2302 = vmatpush.msra.mxu0 %v2279
        %2303 = vmatpush.msra.mxu0 %v2278
        %2304 = vmatpush.msra.mxu0 %v2277
        %2305 = vmatpush.msra.mxu0 %v2276
        %2306 = vmatpush.msra.mxu0 %v2275
        %2307 = vmatpush.msra.mxu0 %v2274
        %2308 = vmatpush.msra.mxu0 %v2273
        %2309 = vmatmul.f32.gmra.mxu0 %v2241
        %v2310 = vpop.f32.mrf.mxu0
        %v2311 = vadd.f32 %v2291, %v2310
        %2312 = vmatmul.f32.gmra.mxu0 %v2242
        %v2313 = vpop.f32.mrf.mxu0
        %v2314 = vadd.f32 %v2291, %v2313
        %2315 = vmatmul.f32.gmra.mxu0 %v2243
        %v2316 = vpop.f32.mrf.mxu0
        %v2317 = vadd.f32 %v2291, %v2316
        %2318 = vmatmul.f32.gmra.mxu0 %v2244
        %v2319 = vpop.f32.mrf.mxu0
        %v2320 = vadd.f32 %v2291, %v2319
        %2321 = vmatmul.f32.gmra.mxu0 %v2245
        %v2322 = vpop.f32.mrf.mxu0
        %v2323 = vadd.f32 %v2291, %v2322
        %2324 = vmatmul.f32.gmra.mxu0 %v2246
        %v2325 = vpop.f32.mrf.mxu0
        %v2326 = vadd.f32 %v2291, %v2325
        %2327 = vmatmul.f32.gmra.mxu0 %v2247
        %v2328 = vpop.f32.mrf.mxu0
        %v2329 = vadd.f32 %v2291, %v2328
        %2330 = vmatmul.f32.gmra.mxu0 %v2248
        %v2331 = vpop.f32.mrf.mxu0
        %v2332 = vadd.f32 %v2291, %v2331
        %2333 = vmatmul.f32.gmra.mxu0 %v2249
        %v2334 = vpop.f32.mrf.mxu0
        %v2335 = vadd.f32 %v2291, %v2334
        %2336 = vmatmul.f32.gmra.mxu0 %v2250
        %v2337 = vpop.f32.mrf.mxu0
        %v2338 = vadd.f32 %v2291, %v2337
        %2339 = vmatmul.f32.gmra.mxu0 %v2251
        %v2340 = vpop.f32.mrf.mxu0
        %v2341 = vadd.f32 %v2291, %v2340
        %2342 = vmatmul.f32.gmra.mxu0 %v2252
        %v2343 = vpop.f32.mrf.mxu0
        %v2344 = vadd.f32 %v2291, %v2343
        %2345 = vmatmul.f32.gmra.mxu0 %v2253
        %v2346 = vpop.f32.mrf.mxu0
        %v2347 = vadd.f32 %v2291, %v2346
        %2348 = vmatmul.f32.gmra.mxu0 %v2254
        %v2349 = vpop.f32.mrf.mxu0
        %v2350 = vadd.f32 %v2291, %v2349
        %2351 = vmatmul.f32.gmra.mxu0 %v2255
        %v2352 = vpop.f32.mrf.mxu0
        %v2353 = vadd.f32 %v2291, %v2352
        %2354 = vmatmul.f32.gmra.mxu0 %v2256
        %v2355 = vpop.f32.mrf.mxu0
        %v2356 = vadd.f32 %v2291, %v2355
        %2357 = vmatmul.f32.gmra.mxu0 %v2257
        %v2358 = vpop.f32.mrf.mxu0
        %v2359 = vadd.f32 %v2291, %v2358
        %2360 = vmatmul.f32.gmra.mxu0 %v2258
        %v2361 = vpop.f32.mrf.mxu0
        %v2362 = vadd.f32 %v2291, %v2361
        %2363 = vmatmul.f32.gmra.mxu0 %v2259
        %v2364 = vpop.f32.mrf.mxu0
        %v2365 = vadd.f32 %v2291, %v2364
        %2366 = vmatmul.f32.gmra.mxu0 %v2260
        %v2367 = vpop.f32.mrf.mxu0
        %v2368 = vadd.f32 %v2291, %v2367
        %2369 = vmatmul.f32.gmra.mxu0 %v2261
        %v2370 = vpop.f32.mrf.mxu0
        %v2371 = vadd.f32 %v2291, %v2370
        %2372 = vmatmul.f32.gmra.mxu0 %v2262
        %v2373 = vpop.f32.mrf.mxu0
        %v2374 = vadd.f32 %v2291, %v2373
        %2375 = vmatmul.f32.gmra.mxu0 %v2263
        %v2376 = vpop.f32.mrf.mxu0
        %v2377 = vadd.f32 %v2291, %v2376
        %2378 = vmatmul.f32.gmra.mxu0 %v2264
        %v2379 = vpop.f32.mrf.mxu0
        %v2380 = vadd.f32 %v2291, %v2379
        %2381 = vmatmul.f32.gmra.mxu0 %v2265
        %v2382 = vpop.f32.mrf.mxu0
        %v2383 = vadd.f32 %v2291, %v2382
        %2384 = vmatmul.f32.gmra.mxu0 %v2266
        %v2385 = vpop.f32.mrf.mxu0
        %v2386 = vadd.f32 %v2291, %v2385
        %2387 = vmatmul.f32.gmra.mxu0 %v2267
        %v2388 = vpop.f32.mrf.mxu0
        %v2389 = vadd.f32 %v2291, %v2388
        %2390 = vmatmul.f32.gmra.mxu0 %v2268
        %v2391 = vpop.f32.mrf.mxu0
        %v2392 = vadd.f32 %v2291, %v2391
        %2393 = vmatmul.f32.gmra.mxu0 %v2269
        %v2394 = vpop.f32.mrf.mxu0
        %v2395 = vadd.f32 %v2291, %v2394
        %2396 = vmatmul.f32.gmra.mxu0 %v2270
        %v2397 = vpop.f32.mrf.mxu0
        %v2398 = vadd.f32 %v2291, %v2397
        %2399 = vmatmul.f32.gmra.mxu0 %v2271
        %v2400 = vpop.f32.mrf.mxu0
        %v2401 = vadd.f32 %v2291, %v2400
        %2402 = vmatmul.f32.gmra.mxu0 %v2272
        %v2403 = vpop.f32.mrf.mxu0
        %v2404 = vadd.f32 %v2291, %v2403
        %2405 = vdwg.mxu0
        %v2406 = vld [vmem:[#allocation10] sm:$0xff]
        %v2407 = vld [vmem:[#allocation10 + $0x8] sm:$0xff]
        %v2408 = vld [vmem:[#allocation10 + $0x10] sm:$0xff]
        %v2409 = vld [vmem:[#allocation10 + $0x18] sm:$0xff]
        %v2410 = vld [vmem:[#allocation10 + $0x20] sm:$0xff]
        %v2411 = vld [vmem:[#allocation10 + $0x28] sm:$0xff]
        %v2412 = vld [vmem:[#allocation10 + $0x30] sm:$0xff]
        %v2413 = vld [vmem:[#allocation10 + $0x38] sm:$0xff]
        %v2414 = vld [vmem:[#allocation10 + $0x40] sm:$0xff]
        %v2415 = vld [vmem:[#allocation10 + $0x48] sm:$0xff]
        %v2416 = vld [vmem:[#allocation10 + $0x50] sm:$0xff]
        %v2417 = vld [vmem:[#allocation10 + $0x58] sm:$0xff]
        %v2418 = vld [vmem:[#allocation10 + $0x60] sm:$0xff]
        %v2419 = vld [vmem:[#allocation10 + $0x68] sm:$0xff]
        %v2420 = vld [vmem:[#allocation10 + $0x70] sm:$0xff]
        %v2421 = vld [vmem:[#allocation10 + $0x78] sm:$0xff]
        %v2422 = vld [vmem:[%s8] sm:$0x1]
        %v2424 = vperm.slane %v2422, 0
        %2426 = vmatpush.msra.mxu0 %v2421
        %2427 = vmatpush.msra.mxu0 %v2420
        %2428 = vmatpush.msra.mxu0 %v2419
        %2429 = vmatpush.msra.mxu0 %v2418
        %2430 = vmatpush.msra.mxu0 %v2417
        %2431 = vmatpush.msra.mxu0 %v2416
        %2432 = vmatpush.msra.mxu0 %v2415
        %2433 = vmatpush.msra.mxu0 %v2414
        %2434 = vmatpush.msra.mxu0 %v2413
        %2435 = vmatpush.msra.mxu0 %v2412
        %2436 = vmatpush.msra.mxu0 %v2411
        %2437 = vmatpush.msra.mxu0 %v2410
        %2438 = vmatpush.msra.mxu0 %v2409
        %2439 = vmatpush.msra.mxu0 %v2408
        %2440 = vmatpush.msra.mxu0 %v2407
        %2441 = vmatpush.msra.mxu0 %v2406
        %2442 = vmatmul.f32.gmra.mxu0 %v419
        %v2443 = vpop.f32.mrf.mxu0
        %v2444 = vadd.f32 %v2424, %v2443
        %2445 = vmatmul.f32.gmra.mxu0 %v420
        %v2446 = vpop.f32.mrf.mxu0
        %v2447 = vadd.f32 %v2424, %v2446
        %2448 = vmatmul.f32.gmra.mxu0 %v421
        %v2449 = vpop.f32.mrf.mxu0
        %v2450 = vadd.f32 %v2424, %v2449
        %2451 = vmatmul.f32.gmra.mxu0 %v422
        %v2452 = vpop.f32.mrf.mxu0
        %v2453 = vadd.f32 %v2424, %v2452
        %2454 = vmatmul.f32.gmra.mxu0 %v423
        %v2455 = vpop.f32.mrf.mxu0
        %v2456 = vadd.f32 %v2424, %v2455
        %2457 = vmatmul.f32.gmra.mxu0 %v424
        %v2458 = vpop.f32.mrf.mxu0
        %v2459 = vadd.f32 %v2424, %v2458
        %2460 = vmatmul.f32.gmra.mxu0 %v425
        %v2461 = vpop.f32.mrf.mxu0
        %v2462 = vadd.f32 %v2424, %v2461
        %2463 = vmatmul.f32.gmra.mxu0 %v426
        %v2464 = vpop.f32.mrf.mxu0
        %v2465 = vadd.f32 %v2424, %v2464
        %2466 = vmatmul.f32.gmra.mxu0 %v427
        %v2467 = vpop.f32.mrf.mxu0
        %v2468 = vadd.f32 %v2424, %v2467
        %2469 = vmatmul.f32.gmra.mxu0 %v428
        %v2470 = vpop.f32.mrf.mxu0
        %v2471 = vadd.f32 %v2424, %v2470
        %2472 = vmatmul.f32.gmra.mxu0 %v429
        %v2473 = vpop.f32.mrf.mxu0
        %v2474 = vadd.f32 %v2424, %v2473
        %2475 = vmatmul.f32.gmra.mxu0 %v430
        %v2476 = vpop.f32.mrf.mxu0
        %v2477 = vadd.f32 %v2424, %v2476
        %2478 = vmatmul.f32.gmra.mxu0 %v431
        %v2479 = vpop.f32.mrf.mxu0
        %v2480 = vadd.f32 %v2424, %v2479
        %2481 = vmatmul.f32.gmra.mxu0 %v432
        %v2482 = vpop.f32.mrf.mxu0
        %v2483 = vadd.f32 %v2424, %v2482
        %2484 = vmatmul.f32.gmra.mxu0 %v433
        %v2485 = vpop.f32.mrf.mxu0
        %v2486 = vadd.f32 %v2424, %v2485
        %2487 = vmatmul.f32.gmra.mxu0 %v434
        %v2488 = vpop.f32.mrf.mxu0
        %v2489 = vadd.f32 %v2424, %v2488
        %2490 = vmatmul.f32.gmra.mxu0 %v435
        %v2491 = vpop.f32.mrf.mxu0
        %v2492 = vadd.f32 %v2424, %v2491
        %2493 = vmatmul.f32.gmra.mxu0 %v436
        %v2494 = vpop.f32.mrf.mxu0
        %v2495 = vadd.f32 %v2424, %v2494
        %2496 = vmatmul.f32.gmra.mxu0 %v437
        %v2497 = vpop.f32.mrf.mxu0
        %v2498 = vadd.f32 %v2424, %v2497
        %2499 = vmatmul.f32.gmra.mxu0 %v438
        %v2500 = vpop.f32.mrf.mxu0
        %v2501 = vadd.f32 %v2424, %v2500
        %2502 = vmatmul.f32.gmra.mxu0 %v439
        %v2503 = vpop.f32.mrf.mxu0
        %v2504 = vadd.f32 %v2424, %v2503
        %2505 = vmatmul.f32.gmra.mxu0 %v440
        %v2506 = vpop.f32.mrf.mxu0
        %v2507 = vadd.f32 %v2424, %v2506
        %2508 = vmatmul.f32.gmra.mxu0 %v441
        %v2509 = vpop.f32.mrf.mxu0
        %v2510 = vadd.f32 %v2424, %v2509
        %2511 = vmatmul.f32.gmra.mxu0 %v442
        %v2512 = vpop.f32.mrf.mxu0
        %v2513 = vadd.f32 %v2424, %v2512
        %2514 = vmatmul.f32.gmra.mxu0 %v443
        %v2515 = vpop.f32.mrf.mxu0
        %v2516 = vadd.f32 %v2424, %v2515
        %2517 = vmatmul.f32.gmra.mxu0 %v444
        %v2518 = vpop.f32.mrf.mxu0
        %v2519 = vadd.f32 %v2424, %v2518
        %2520 = vmatmul.f32.gmra.mxu0 %v445
        %v2521 = vpop.f32.mrf.mxu0
        %v2522 = vadd.f32 %v2424, %v2521
        %2523 = vmatmul.f32.gmra.mxu0 %v446
        %v2524 = vpop.f32.mrf.mxu0
        %v2525 = vadd.f32 %v2424, %v2524
        %2526 = vmatmul.f32.gmra.mxu0 %v447
        %v2527 = vpop.f32.mrf.mxu0
        %v2528 = vadd.f32 %v2424, %v2527
        %2529 = vmatmul.f32.gmra.mxu0 %v448
        %v2530 = vpop.f32.mrf.mxu0
        %v2531 = vadd.f32 %v2424, %v2530
        %2532 = vmatmul.f32.gmra.mxu0 %v449
        %v2533 = vpop.f32.mrf.mxu0
        %v2534 = vadd.f32 %v2424, %v2533
        %2535 = vmatmul.f32.gmra.mxu0 %v450
        %v2536 = vpop.f32.mrf.mxu0
        %v2537 = vadd.f32 %v2424, %v2536
        %2538 = vdwg.mxu0
        %v2539 = vadd.f32 %v2311, %v2444
        %v2540 = vadd.f32 %v2314, %v2447
        %v2541 = vadd.f32 %v2317, %v2450
        %v2542 = vadd.f32 %v2320, %v2453
        %v2543 = vadd.f32 %v2323, %v2456
        %v2544 = vadd.f32 %v2326, %v2459
        %v2545 = vadd.f32 %v2329, %v2462
        %v2546 = vadd.f32 %v2332, %v2465
        %v2547 = vadd.f32 %v2335, %v2468
        %v2548 = vadd.f32 %v2338, %v2471
        %v2549 = vadd.f32 %v2341, %v2474
        %v2550 = vadd.f32 %v2344, %v2477
        %v2551 = vadd.f32 %v2347, %v2480
        %v2552 = vadd.f32 %v2350, %v2483
        %v2553 = vadd.f32 %v2353, %v2486
        %v2554 = vadd.f32 %v2356, %v2489
        %v2555 = vadd.f32 %v2359, %v2492
        %v2556 = vadd.f32 %v2362, %v2495
        %v2557 = vadd.f32 %v2365, %v2498
        %v2558 = vadd.f32 %v2368, %v2501
        %v2559 = vadd.f32 %v2371, %v2504
        %v2560 = vadd.f32 %v2374, %v2507
        %v2561 = vadd.f32 %v2377, %v2510
        %v2562 = vadd.f32 %v2380, %v2513
        %v2563 = vadd.f32 %v2383, %v2516
        %v2564 = vadd.f32 %v2386, %v2519
        %v2565 = vadd.f32 %v2389, %v2522
        %v2566 = vadd.f32 %v2392, %v2525
        %v2567 = vadd.f32 %v2395, %v2528
        %v2568 = vadd.f32 %v2398, %v2531
        %v2569 = vadd.f32 %v2401, %v2534
        %v2570 = vadd.f32 %v2404, %v2537
        %v2571 = vmax.f32 %v2539, 0.0
        %v2572 = vmax.f32 %v2540, 0.0
        %v2573 = vmax.f32 %v2541, 0.0
        %v2574 = vmax.f32 %v2542, 0.0
        %v2575 = vmax.f32 %v2543, 0.0
        %v2576 = vmax.f32 %v2544, 0.0
        %v2577 = vmax.f32 %v2545, 0.0
        %v2578 = vmax.f32 %v2546, 0.0
        %v2579 = vmax.f32 %v2547, 0.0
        %v2580 = vmax.f32 %v2548, 0.0
        %v2581 = vmax.f32 %v2549, 0.0
        %v2582 = vmax.f32 %v2550, 0.0
        %v2583 = vmax.f32 %v2551, 0.0
        %v2584 = vmax.f32 %v2552, 0.0
        %v2585 = vmax.f32 %v2553, 0.0
        %v2586 = vmax.f32 %v2554, 0.0
        %v2587 = vmax.f32 %v2555, 0.0
        %v2588 = vmax.f32 %v2556, 0.0
        %v2589 = vmax.f32 %v2557, 0.0
        %v2590 = vmax.f32 %v2558, 0.0
        %v2591 = vmax.f32 %v2559, 0.0
        %v2592 = vmax.f32 %v2560, 0.0
        %v2593 = vmax.f32 %v2561, 0.0
        %v2594 = vmax.f32 %v2562, 0.0
        %v2595 = vmax.f32 %v2563, 0.0
        %v2596 = vmax.f32 %v2564, 0.0
        %v2597 = vmax.f32 %v2565, 0.0
        %v2598 = vmax.f32 %v2566, 0.0
        %v2599 = vmax.f32 %v2567, 0.0
        %v2600 = vmax.f32 %v2568, 0.0
        %v2601 = vmax.f32 %v2569, 0.0
        %v2602 = vmax.f32 %v2570, 0.0
        %2603 = vst [vmem:[%s418] sm:$0xff] %v2571
        %2604 = vst [vmem:[%s418 + $0x8] sm:$0xff] %v2572
        %2605 = vst [vmem:[%s418 + $0x10] sm:$0xff] %v2573
        %2606 = vst [vmem:[%s418 + $0x18] sm:$0xff] %v2574
        %2607 = vst [vmem:[%s418 + $0x20] sm:$0xff] %v2575
        %2608 = vst [vmem:[%s418 + $0x28] sm:$0xff] %v2576
        %2609 = vst [vmem:[%s418 + $0x30] sm:$0xff] %v2577
        %2610 = vst [vmem:[%s418 + $0x38] sm:$0xff] %v2578
        %2611 = vst [vmem:[%s418 + $0x40] sm:$0xff] %v2579
        %2612 = vst [vmem:[%s418 + $0x48] sm:$0xff] %v2580
        %2613 = vst [vmem:[%s418 + $0x50] sm:$0xff] %v2581
        %2614 = vst [vmem:[%s418 + $0x58] sm:$0xff] %v2582
        %2615 = vst [vmem:[%s418 + $0x60] sm:$0xff] %v2583
        %2616 = vst [vmem:[%s418 + $0x68] sm:$0xff] %v2584
        %2617 = vst [vmem:[%s418 + $0x70] sm:$0xff] %v2585
        %2618 = vst [vmem:[%s418 + $0x78] sm:$0xff] %v2586
        %2619 = vst [vmem:[%s418 + $0x80] sm:$0xff] %v2587
        %2620 = vst [vmem:[%s418 + $0x88] sm:$0xff] %v2588
        %2621 = vst [vmem:[%s418 + $0x90] sm:$0xff] %v2589
        %2622 = vst [vmem:[%s418 + $0x98] sm:$0xff] %v2590
        %2623 = vst [vmem:[%s418 + $0xa0] sm:$0xff] %v2591
        %2624 = vst [vmem:[%s418 + $0xa8] sm:$0xff] %v2592
        %2625 = vst [vmem:[%s418 + $0xb0] sm:$0xff] %v2593
        %2626 = vst [vmem:[%s418 + $0xb8] sm:$0xff] %v2594
        %2627 = vst [vmem:[%s418 + $0xc0] sm:$0xff] %v2595
        %2628 = vst [vmem:[%s418 + $0xc8] sm:$0xff] %v2596
        %2629 = vst [vmem:[%s418 + $0xd0] sm:$0xff] %v2597
        %2630 = vst [vmem:[%s418 + $0xd8] sm:$0xff] %v2598
        %2631 = vst [vmem:[%s418 + $0xe0] sm:$0xff] %v2599
        %2632 = vst [vmem:[%s418 + $0xe8] sm:$0xff] %v2600
        %2633 = vst [vmem:[%s418 + $0xf0] sm:$0xff] %v2601
        %2634 = vst [vmem:[%s418 + $0xf8] sm:$0xff] %v2602
        %s2635 = sand.u32 %s230, 1
        %s2636 = scalar_lea.sflag [#allocation4], %s2635
        %s2637 = sand.u32 %s230, 1
        %s2638 = smul.addr %s2637, 256
        %s2639 = scalar_lea.vmem [#allocation11], %s2638
        // Predicated region
        $region77: #{tpu_custom_call.1} parent=55 // pred_check
          %p2640 = pneg %p240
        $region78: #{tpu_custom_call.1} parent=55 // pred_check_branch
          %2642 = sbr.rel (%p2640) target = $region80
        $region79: #{tpu_custom_call.1} parent=55 // pred_region
          %2644 = vsyncadd %s2636, 0
          %s2645 = smul.addr %s28, 32
          %s2646 = smul.addr %s2645, 8
          %s2647 = scalar_lea.hbm %s9, %s2646
          %s2648 = sshll.u32 %s2639, 4
          %s2649 = int_to_ptr.vmem [resolvable:$true] %s2648
          %s2650 = sshll.u32 %s2647, 4
          %s2651 = int_to_ptr.hbm [resolvable:$true] %s2650
          %2656 = dma.vmem_to_hbm [thread:$0]  %s2649, 4096, %s2651, %s2636, 128, 128, 8
        $region80: #{tpu_custom_call.1} parent=55 // pred_fallthru
          _
      $region56: #{tpu_custom_call.1} parent=5 // pred_fallthru
        _
      %p2657 = scmp.le.s32.totalorder 2, %s23
      // Predicated region
      $region81: #{tpu_custom_call.1} parent=5 // pred_check
        %p2658 = pneg %p2657
      $region82: #{tpu_custom_call.1} parent=5 // pred_check_branch
        %2660 = sbr.rel (%p2658) target = $region84
      $region83: #{tpu_custom_call.1} parent=5 // pred_region
        %s2661 = ssub.s32 %s23, 2
        // Predicated region
        $region85: #{tpu_custom_call.1} parent=83 // pred_check
          %p2662 = pneg %p246
        $region86: #{tpu_custom_call.1} parent=83 // pred_check_branch
          %2664 = sbr.rel (%p2662) target = $region88
        $region87: #{tpu_custom_call.1} parent=83 // pred_region
          %s2665 = sand.u32 %s231, 1
          %s2666 = scalar_lea.sflag [#allocation4], %s2665
          %s2667 = sand.u32 %s231, 1
          %s2668 = smul.addr %s2667, 256
          %s2669 = scalar_lea.vmem [#allocation11], %s2668
          %2671 = dma.done %s2666, 4096
        $region88: #{tpu_custom_call.1} parent=83 // pred_fallthru
          _
      $region84: #{tpu_custom_call.1} parent=5 // pred_fallthru
        _
    $region6: #{tpu_custom_call.1} parent=1 // loop_footer
      %s27 = sadd.s32 1, %s23
    $region7: #{tpu_custom_call.1} parent=1 // loop_footer_branch
      %22 = sbr.rel target = $region3
    $region8: #{tpu_custom_call.1} parent=1 // loop_exit
      _
    %2672 = vsyncpa [#allocation3], 1
    %s2673 = scalar_lea.sflag [#allocation3], 1
    %2674 = vsyncpa %s2673, 1
    %2675 = vsyncpa [#allocation6], 1
    %2676 = vsyncpa [#allocation9], 1
    %2677 = vsyncpa [#allocation4], 1
    %s2678 = scalar_lea.sflag [#allocation4], 1
    %2679 = vsyncpa %s2678, 1

</llo_original>
